<compile_context>
chip_gen: v6e
topology: v6e:2x2x1
jax: 0.10.0
libtpu: 0.0.40
codegen_flags: <defaults>
</compile_context>

<pallas_src>
import functools

import jax
import jax.numpy as jnp
from jax.experimental import pallas as pl
from jax.experimental.pallas import tpu as pltpu


def _round_up(x, m):
    return (x + m - 1) // m * m


def _pad_gates(w, h, hp):
    """Pad each of the 3 stacked GRU gate blocks (leading axis) from h to hp rows."""
    if h == hp:
        return w
    pads = [(0, hp - h)] + [(0, 0)] * (w.ndim - 1)
    return jnp.concatenate(
        [jnp.pad(w[g * h:(g + 1) * h], pads) for g in range(3)], axis=0)


def _gru_kernel(x_ref, wi_ref, bgi_ref, wh_ref, bhn_ref, h_ref, *, t_blk, seq_len):
    """One (batch tile, time chunk) grid step of the GRU recurrence.

    x_ref:   [t_blk, Bb, D]   bf16/f32   input chunk (time-major)
    wi_ref:  [D, 3Hp]         bf16/f32   W_ih^T (gate order r|z|n, padded to Hp)
    bgi_ref: [1, 3Hp]         f32        b_ih + [b_hr | b_hz | 0]
    wh_ref:  [Hp, 3Hp]        f32/bf16   W_hh^T
    bhn_ref: [1, Hp]          f32        b_hn (must stay inside r*(...))
    h_ref:   [Bb, Hp]         f32        hidden state, carried across the t axis
    """
    Bb = x_ref.shape[1]
    Hp = wh_ref.shape[0]
    t_idx = pl.program_id(1)

    @pl.when(t_idx == 0)
    def _init():
        h_ref[...] = jnp.zeros_like(h_ref)

    # Loop-invariant loads / broadcasts hoisted out of the unrolled step loop
    # (JAX does not CSE broadcast_in_dim across iterations).
    wi = wi_ref[...]                                        # [D, 3Hp]
    wh = wh_ref[...]                                        # [Hp, 3Hp]
    bgi = jnp.broadcast_to(bgi_ref[...], (Bb, 3 * Hp))      # [Bb, 3Hp] f32
    bhn = jnp.broadcast_to(bhn_ref[...], (Bb, Hp))          # [Bb, Hp]  f32

    h = h_ref[...]                                          # [Bb, Hp] f32 carry

    def sigmoid(v):
        # tanh-form sigmoid: one EUP push per element instead of exp + divide.
        return 0.5 * jnp.tanh(0.5 * v) + 0.5

    needs_mask = (seq_len % t_blk) != 0   # only the padded tail chunk needs it

    # t_blk is small & static: chunked full unroll; the grid's "arbitrary" time
    # axis is the outer loop, so long T never explodes bundle count.
    for lt in range(t_blk):
        # Input projection: off the serial dependence chain (does not read h).
        gi = jnp.dot(x_ref[lt], wi, preferred_element_type=jnp.float32) + bgi
        # Recurrent matmul: the only matmul on the serial chain.
        gh = jnp.dot(h.astype(wh.dtype), wh, preferred_element_type=jnp.float32)
        # Gate slices are lane-tile aligned because Hp is a multiple of 128.
        r = sigmoid(gi[:, 0:Hp] + gh[:, 0:Hp])
        z = sigmoid(gi[:, Hp:2 * Hp] + gh[:, Hp:2 * Hp])
        n = jnp.tanh(gi[:, 2 * Hp:] + r * (gh[:, 2 * Hp:] + bhn))
        h_new = (1.0 - z) * n + z * h                       # f32 gate math
        if needs_mask:
            # Mask timesteps past the real sequence length (T padded to t_blk).
            h_new = jnp.where(t_idx * t_blk + lt < seq_len, h_new, h)
        h = h_new

    h_ref[...] = h


@functools.partial(
    jax.jit, static_argnames=("input_bf16", "recurrent_bf16", "block_b", "t_blk"))
def sent_classifier_forward(sentence_vec, params, *, input_bf16=True,
                            recurrent_bf16=False, block_b=None, t_blk=8):
    """sentence_vec: [B, T, D] f32. Returns (predicted_class [B] i32, logits [B, C] f32)."""
    w_ih, w_hh, b_ih, b_hh = (params["w_ih"], params["w_hh"],
                              params["b_ih"], params["b_hh"])
    w_cls, b_cls = params["w_cls"], params["b_cls"]

    B, T, D = sentence_vec.shape
    H = w_hh.shape[1]
    Hp = _round_up(H, 128)        # lane-tile aligned gate slices (500 -> 512)

    in_dt = jnp.bfloat16 if input_bf16 else jnp.float32
    rec_dt = jnp.bfloat16 if recurrent_bf16 else jnp.float32

    # ---- batch / time tiling -------------------------------------------------
    if block_b is None:
        # Single batch tile by default (best on single-TC v5e/v6e: the grid is a
        # serial loop).  TODO(synk): on v7x use ~B/2 so both TensorCores get work.
        block_b = min(_round_up(B, 8), 256)
    assert block_b % 8 == 0, "block_b must be a multiple of 8"
    B_pad = _round_up(B, block_b)
    t_blk = max(1, min(t_blk, T))
    T_pad = _round_up(T, t_blk)

    # ---- weights: gate-blocked padding to Hp, fold biases --------------------
    w_ih_p = _pad_gates(w_ih, H, Hp)                         # [3Hp, D]
    w_hh_p = _pad_gates(w_hh, H, Hp)                         # [3Hp, H]
    if Hp != H:
        w_hh_p = jnp.pad(w_hh_p, ((0, 0), (0, Hp - H)))      # [3Hp, Hp]
    b_ih_p = _pad_gates(b_ih, H, Hp)                         # [3Hp]
    b_hh_p = _pad_gates(b_hh, H, Hp)                         # [3Hp]
    # Fold b_hr / b_hz into the input-side bias; only b_hn must stay inside r*(...).
    b_gi = b_ih_p + jnp.concatenate(
        [b_hh_p[:Hp], b_hh_p[Hp:2 * Hp], jnp.zeros((Hp,), b_hh_p.dtype)])
    b_hn = b_hh_p[2 * Hp:]

    wi_t = jnp.transpose(w_ih_p, (1, 0)).astype(in_dt)       # [D, 3Hp]
    wh_t = jnp.transpose(w_hh_p, (1, 0)).astype(rec_dt)      # [Hp, 3Hp]
    b_gi2 = b_gi.reshape(1, 3 * Hp).astype(jnp.float32)
    b_hn2 = b_hn.reshape(1, Hp).astype(jnp.float32)

    # ---- x stream: time-major, padded, narrow dtype (the only O(T) HBM stream)
    x = jnp.transpose(sentence_vec, (1, 0, 2))               # [T, B, D]
    x = jnp.pad(x, ((0, T_pad - T), (0, B_pad - B), (0, 0))).astype(in_dt)

    grid = (B_pad // block_b, T_pad // t_blk)
    kernel = functools.partial(_gru_kernel, t_blk=t_blk, seq_len=T)

    h_pad = pl.pallas_call(
        kernel,
        out_shape=jax.ShapeDtypeStruct((B_pad, Hp), jnp.float32),
        grid=grid,
        in_specs=[
            pl.BlockSpec((t_blk, block_b, D), lambda b, t: (t, b, 0)),   # x chunk
            pl.BlockSpec((D, 3 * Hp), lambda b, t: (0, 0)),              # W_ih^T
            pl.BlockSpec((1, 3 * Hp), lambda b, t: (0, 0)),              # folded bias
            pl.BlockSpec((Hp, 3 * Hp), lambda b, t: (0, 0)),             # W_hh^T
            pl.BlockSpec((1, Hp), lambda b, t: (0, 0)),                  # b_hn
        ],
        # Constant block index along t -> h stays resident in VMEM (the carry).
        out_specs=pl.BlockSpec((block_b, Hp), lambda b, t: (b, 0)),
        compiler_params=pltpu.CompilerParams(
            dimension_semantics=("parallel", "arbitrary"),
            vmem_limit_bytes=64 * 1024 * 1024),
    )(x, wi_t, b_gi2, wh_t, b_hn2)

    # Epilogue in XLA: lane-dense [B, Hp] kernel output avoids a C=8 masked store;
    # ReLU + tiny classifier + argmax are negligible here.
    h = h_pad[:B, :H]
    feat = jnp.maximum(h, 0.0)
    logits = feat @ jnp.transpose(w_cls, (1, 0)) + b_cls
    pred = jnp.argmax(logits, axis=1).astype(jnp.int32)
    return pred, logits


def init_params(key, input_dim, hidden_dim, n_classes):
    """Deterministic PyTorch-style uniform(-1/sqrt(H), 1/sqrt(H)) init."""
    ks = jax.random.split(key, 6)
    s = 1.0 / jnp.sqrt(jnp.float32(hidden_dim))
    u = lambda k, shape: jax.random.uniform(k, shape, jnp.float32, -s, s)
    return {
        "w_ih": u(ks[0], (3 * hidden_dim, input_dim)),
        "w_hh": u(ks[1], (3 * hidden_dim, hidden_dim)),
        "b_ih": u(ks[2], (3 * hidden_dim,)),
        "b_hh": u(ks[3], (3 * hidden_dim,)),
        "w_cls": u(ks[4], (n_classes, hidden_dim)),
        "b_cls": u(ks[5], (n_classes,)),
    }


def _reference_forward(sentence_vec, params):
    """Pure-JAX f32 reference (same intended semantics) for correctness check."""
    w_ih, w_hh, b_ih, b_hh = (params["w_ih"], params["w_hh"],
                              params["b_ih"], params["b_hh"])
    w_cls, b_cls = params["w_cls"], params["b_cls"]
    B, T, D = sentence_vec.shape
    H = w_hh.shape[1]
    h = jnp.zeros((B, H), jnp.float32)
    for t in range(T):
        x_t = sentence_vec[:, t, :]
        gi = x_t @ w_ih.T + b_ih
        gh = h @ w_hh.T + b_hh
        i_r, i_z, i_n = gi[:, :H], gi[:, H:2 * H], gi[:, 2 * H:]
        h_r, h_z, h_n = gh[:, :H], gh[:, H:2 * H], gh[:, 2 * H:]
        r = jax.nn.sigmoid(i_r + h_r)
        z = jax.nn.sigmoid(i_z + h_z)
        n = jnp.tanh(i_n + r * h_n)
        h = (1.0 - z) * n + z * h
    feat = jnp.maximum(h, 0.0)
    logits = feat @ w_cls.T + b_cls
    return jnp.argmax(logits, axis=1), logits


if __name__ == "__main__":
    # Small shapes consistent with the module: hidden_dim scaled from 500 down to
    # a deliberately non-128-aligned 100 to exercise the gate padding path.
    B, T, D = 16, 8, 32          # batch, seq len, input_dim
    H, C = 100, 8                # hidden_dim, n_classes

    key = jax.random.PRNGKey(0)
    k_x, k_p = jax.random.split(key)
    sentence_vec = jax.random.normal(k_x, (B, T, D), jnp.float32)
    params = init_params(k_p, D, H, C)

    ref_class, ref_logits = _reference_forward(sentence_vec, params)

    # 1) all-f32 path, 2 batch tiles (parallel axis) and a time-chunk size that
    #    does NOT divide T (exercises the padded-timestep mask): strict check.
    pred32, logits32 = sent_classifier_forward(
        sentence_vec, params, input_bf16=False, recurrent_bf16=False,
        block_b=8, t_blk=3)
    logits32 = jax.block_until_ready(logits32)
    assert jnp.allclose(logits32, ref_logits, atol=1e-4, rtol=1e-4), "f32 logits mismatch"
    assert jnp.array_equal(pred32, ref_class), "f32 argmax mismatch"

    # 2) default perf config: bf16 x-stream + in-kernel input projection,
    #    f32 recurrence, single batch tile, 2 time chunks.
    pred_bf, logits_bf = sent_classifier_forward(sentence_vec, params, t_blk=4)
    logits_bf = jax.block_until_ready(logits_bf)
    assert jnp.allclose(logits_bf, ref_logits, atol=1e-1, rtol=1e-1), "bf16 logits mismatch"
    top2 = jnp.sort(ref_logits, axis=1)[:, -2:]
    margin = top2[:, 1] - top2[:, 0]
    # argmax may only differ on near-ties (within the bf16 tolerance).
    assert bool(jnp.all((pred_bf == ref_class) | (margin < 1e-1))), "bf16 argmax mismatch"

    print("KERNEL_OK")
</pallas_src>

<mosaic_0001>
module attributes {stable_mosaic.version = 11 : i64} {
  func.func @_gru_kernel(%arg0: i32, %arg1: i32, %arg2: memref<3x8x32xf32, #tpu.memory_space<vmem>>, %arg3: memref<32x384xf32, #tpu.memory_space<vmem>>, %arg4: memref<1x384xf32, #tpu.memory_space<vmem>>, %arg5: memref<128x384xf32, #tpu.memory_space<vmem>>, %arg6: memref<1x128xf32, #tpu.memory_space<vmem>>, %arg7: memref<8x128xf32, #tpu.memory_space<vmem>>) attributes {dimension_semantics = [#tpu.dimension_semantics<parallel>, #tpu.dimension_semantics<arbitrary>], iteration_bounds = array<i64: 2, 3>, scalar_prefetch = 0 : i64, scratch_operands = 0 : i64, tpu.core_type = #tpu.core_type<tc>, window_params = [{transform_indices = @transform_0, window_bounds = array<i64: 3, 8, 32>}, {pipeline_mode = #tpu.pipeline_mode<synchronous>, transform_indices = @transform_1, window_bounds = array<i64: 32, 384>}, {pipeline_mode = #tpu.pipeline_mode<synchronous>, transform_indices = @transform_2, window_bounds = array<i64: 1, 384>}, {pipeline_mode = #tpu.pipeline_mode<synchronous>, transform_indices = @transform_3, window_bounds = array<i64: 128, 384>}, {pipeline_mode = #tpu.pipeline_mode<synchronous>, transform_indices = @transform_4, window_bounds = array<i64: 1, 128>}, {transform_indices = @transform_5, window_bounds = array<i64: 8, 128>}]} {
    %c0_i32 = arith.constant 0 : i32
    %0 = arith.cmpi eq, %arg1, %c0_i32 : i32
    %1 = arith.extui %0 : i1 to i32
    %c0_i32_0 = arith.constant 0 : i32
    %2 = arith.cmpi ne, %1, %c0_i32_0 : i32
    scf.if %2 {
      %cst_50 = arith.constant 0.000000e+00 : f32
      %133 = vector.broadcast %cst_50 : f32 to vector<8x128xf32>
      %c0_51 = arith.constant 0 : index
      %c0_52 = arith.constant 0 : index
      %134 = vector.load %arg7[%c0_51, %c0_52] : memref<8x128xf32, #tpu.memory_space<vmem>>, vector<8x128xf32>
      tpu.vector_store %arg7[%c0_51, %c0_52], %133 {strides = array<i32>} : memref<8x128xf32, #tpu.memory_space<vmem>>, vector<8x128xf32>,
    } else {
    }
    %c0 = arith.constant 0 : index
    %c0_1 = arith.constant 0 : index
    %3 = vector.load %arg3[%c0, %c0_1] : memref<32x384xf32, #tpu.memory_space<vmem>>, vector<32x384xf32>
    %c0_2 = arith.constant 0 : index
    %c0_3 = arith.constant 0 : index
    %4 = vector.load %arg5[%c0_2, %c0_3] : memref<128x384xf32, #tpu.memory_space<vmem>>, vector<128x384xf32>
    %c0_4 = arith.constant 0 : index
    %c0_5 = arith.constant 0 : index
    %5 = vector.load %arg4[%c0_4, %c0_5] : memref<1x384xf32, #tpu.memory_space<vmem>>, vector<1x384xf32>
    %6 = vector.shape_cast %5 : vector<1x384xf32> to vector<1x384xf32>
    %7 = vector.broadcast %6 : vector<1x384xf32> to vector<8x384xf32>
    %c0_6 = arith.constant 0 : index
    %c0_7 = arith.constant 0 : index
    %8 = vector.load %arg6[%c0_6, %c0_7] : memref<1x128xf32, #tpu.memory_space<vmem>>, vector<1x128xf32>
    %9 = vector.shape_cast %8 : vector<1x128xf32> to vector<1x128xf32>
    %10 = vector.broadcast %9 : vector<1x128xf32> to vector<8x128xf32>
    %c0_8 = arith.constant 0 : index
    %c0_9 = arith.constant 0 : index
    %11 = vector.load %arg7[%c0_8, %c0_9] : memref<8x128xf32, #tpu.memory_space<vmem>>, vector<8x128xf32>
    %c0_10 = arith.constant 0 : index
    %c0_11 = arith.constant 0 : index
    %c0_12 = arith.constant 0 : index
    %12 = vector.load %arg2[%c0_10, %c0_11, %c0_12] : memref<3x8x32xf32, #tpu.memory_space<vmem>>, vector<1x8x32xf32>
    %13 = vector.shape_cast %12 : vector<1x8x32xf32> to vector<8x32xf32>
    %cst = arith.constant dense<0.000000e+00> : vector<8x384xf32>
    %14 = tpu.matmul %13, %3, %cst {dimension_numbers = #tpu.dot_dimension_numbers<[1], [0], [0], [1], [0, 0, 1, 1], [], []>} : vector<8x32xf32>, vector<32x384xf32>, vector<8x384xf32> -> vector<8x384xf32>
    %15 = arith.addf %14, %7 : vector<8x384xf32>
    %cst_13 = arith.constant dense<0.000000e+00> : vector<8x384xf32>
    %16 = tpu.matmul %11, %4, %cst_13 {dimension_numbers = #tpu.dot_dimension_numbers<[1], [0], [0], [1], [0, 0, 1, 1], [], []>} : vector<8x128xf32>, vector<128x384xf32>, vector<8x384xf32> -> vector<8x384xf32>
    %17 = vector.extract_strided_slice %15 {offsets = [0, 0], sizes = [8, 128], strides = [1, 1]} : vector<8x384xf32> to vector<8x128xf32>
    %18 = vector.extract_strided_slice %16 {offsets = [0, 0], sizes = [8, 128], strides = [1, 1]} : vector<8x384xf32> to vector<8x128xf32>
    %19 = arith.addf %17, %18 : vector<8x128xf32>
    %cst_14 = arith.constant 5.000000e-01 : f32
    %20 = vector.broadcast %cst_14 : f32 to vector<8x128xf32>
    %21 = arith.mulf %20, %19 : vector<8x128xf32>
    %22 = math.tanh %21 : vector<8x128xf32>
    %cst_15 = arith.constant 5.000000e-01 : f32
    %23 = vector.broadcast %cst_15 : f32 to vector<8x128xf32>
    %24 = arith.mulf %23, %22 : vector<8x128xf32>
    %cst_16 = arith.constant 5.000000e-01 : f32
    %25 = vector.broadcast %cst_16 : f32 to vector<8x128xf32>
    %26 = arith.addf %24, %25 : vector<8x128xf32>
    %27 = vector.extract_strided_slice %15 {offsets = [0, 128], sizes = [8, 128], strides = [1, 1]} : vector<8x384xf32> to vector<8x128xf32>
    %28 = vector.extract_strided_slice %16 {offsets = [0, 128], sizes = [8, 128], strides = [1, 1]} : vector<8x384xf32> to vector<8x128xf32>
    %29 = arith.addf %27, %28 : vector<8x128xf32>
    %cst_17 = arith.constant 5.000000e-01 : f32
    %30 = vector.broadcast %cst_17 : f32 to vector<8x128xf32>
    %31 = arith.mulf %30, %29 : vector<8x128xf32>
    %32 = math.tanh %31 : vector<8x128xf32>
    %cst_18 = arith.constant 5.000000e-01 : f32
    %33 = vector.broadcast %cst_18 : f32 to vector<8x128xf32>
    %34 = arith.mulf %33, %32 : vector<8x128xf32>
    %cst_19 = arith.constant 5.000000e-01 : f32
    %35 = vector.broadcast %cst_19 : f32 to vector<8x128xf32>
    %36 = arith.addf %34, %35 : vector<8x128xf32>
    %37 = vector.extract_strided_slice %15 {offsets = [0, 256], sizes = [8, 128], strides = [1, 1]} : vector<8x384xf32> to vector<8x128xf32>
    %38 = vector.extract_strided_slice %16 {offsets = [0, 256], sizes = [8, 128], strides = [1, 1]} : vector<8x384xf32> to vector<8x128xf32>
    %39 = arith.addf %38, %10 : vector<8x128xf32>
    %40 = arith.mulf %26, %39 : vector<8x128xf32>
    %41 = arith.addf %37, %40 : vector<8x128xf32>
    %42 = math.tanh %41 : vector<8x128xf32>
    %cst_20 = arith.constant 1.000000e+00 : f32
    %43 = vector.broadcast %cst_20 : f32 to vector<8x128xf32>
    %44 = arith.subf %43, %36 : vector<8x128xf32>
    %45 = arith.mulf %44, %42 : vector<8x128xf32>
    %46 = arith.mulf %36, %11 : vector<8x128xf32>
    %47 = arith.addf %45, %46 : vector<8x128xf32>
    %c3_i32 = arith.constant 3 : i32
    %48 = arith.muli %arg1, %c3_i32 : i32
    %c0_i32_21 = arith.constant 0 : i32
    %49 = arith.addi %48, %c0_i32_21 : i32
    %c8_i32 = arith.constant 8 : i32
    %50 = arith.cmpi slt, %49, %c8_i32 : i32
    %51 = arith.select %50, %47, %11 : vector<8x128xf32>
    %c1 = arith.constant 1 : index
    %c0_22 = arith.constant 0 : index
    %c0_23 = arith.constant 0 : index
    %52 = vector.load %arg2[%c1, %c0_22, %c0_23] : memref<3x8x32xf32, #tpu.memory_space<vmem>>, vector<1x8x32xf32>
    %53 = vector.shape_cast %52 : vector<1x8x32xf32> to vector<8x32xf32>
    %cst_24 = arith.constant dense<0.000000e+00> : vector<8x384xf32>
    %54 = tpu.matmul %53, %3, %cst_24 {dimension_numbers = #tpu.dot_dimension_numbers<[1], [0], [0], [1], [0, 0, 1, 1], [], []>} : vector<8x32xf32>, vector<32x384xf32>, vector<8x384xf32> -> vector<8x384xf32>
    %55 = arith.addf %54, %7 : vector<8x384xf32>
    %cst_25 = arith.constant dense<0.000000e+00> : vector<8x384xf32>
    %56 = tpu.matmul %51, %4, %cst_25 {dimension_numbers = #tpu.dot_dimension_numbers<[1], [0], [0], [1], [0, 0, 1, 1], [], []>} : vector<8x128xf32>, vector<128x384xf32>, vector<8x384xf32> -> vector<8x384xf32>
    %57 = vector.extract_strided_slice %55 {offsets = [0, 0], sizes = [8, 128], strides = [1, 1]} : vector<8x384xf32> to vector<8x128xf32>
    %58 = vector.extract_strided_slice %56 {offsets = [0, 0], sizes = [8, 128], strides = [1, 1]} : vector<8x384xf32> to vector<8x128xf32>
    %59 = arith.addf %57, %58 : vector<8x128xf32>
    %cst_26 = arith.constant 5.000000e-01 : f32
    %60 = vector.broadcast %cst_26 : f32 to vector<8x128xf32>
    %61 = arith.mulf %60, %59 : vector<8x128xf32>
    %62 = math.tanh %61 : vector<8x128xf32>
    %cst_27 = arith.constant 5.000000e-01 : f32
    %63 = vector.broadcast %cst_27 : f32 to vector<8x128xf32>
    %64 = arith.mulf %63, %62 : vector<8x128xf32>
    %cst_28 = arith.constant 5.000000e-01 : f32
    %65 = vector.broadcast %cst_28 : f32 to vector<8x128xf32>
    %66 = arith.addf %64, %65 : vector<8x128xf32>
    %67 = vector.extract_strided_slice %55 {offsets = [0, 128], sizes = [8, 128], strides = [1, 1]} : vector<8x384xf32> to vector<8x128xf32>
    %68 = vector.extract_strided_slice %56 {offsets = [0, 128], sizes = [8, 128], strides = [1, 1]} : vector<8x384xf32> to vector<8x128xf32>
    %69 = arith.addf %67, %68 : vector<8x128xf32>
    %cst_29 = arith.constant 5.000000e-01 : f32
    %70 = vector.broadcast %cst_29 : f32 to vector<8x128xf32>
    %71 = arith.mulf %70, %69 : vector<8x128xf32>
    %72 = math.tanh %71 : vector<8x128xf32>
    %cst_30 = arith.constant 5.000000e-01 : f32
    %73 = vector.broadcast %cst_30 : f32 to vector<8x128xf32>
    %74 = arith.mulf %73, %72 : vector<8x128xf32>
    %cst_31 = arith.constant 5.000000e-01 : f32
    %75 = vector.broadcast %cst_31 : f32 to vector<8x128xf32>
    %76 = arith.addf %74, %75 : vector<8x128xf32>
    %77 = vector.extract_strided_slice %55 {offsets = [0, 256], sizes = [8, 128], strides = [1, 1]} : vector<8x384xf32> to vector<8x128xf32>
    %78 = vector.extract_strided_slice %56 {offsets = [0, 256], sizes = [8, 128], strides = [1, 1]} : vector<8x384xf32> to vector<8x128xf32>
    %79 = arith.addf %78, %10 : vector<8x128xf32>
    %80 = arith.mulf %66, %79 : vector<8x128xf32>
    %81 = arith.addf %77, %80 : vector<8x128xf32>
    %82 = math.tanh %81 : vector<8x128xf32>
    %cst_32 = arith.constant 1.000000e+00 : f32
    %83 = vector.broadcast %cst_32 : f32 to vector<8x128xf32>
    %84 = arith.subf %83, %76 : vector<8x128xf32>
    %85 = arith.mulf %84, %82 : vector<8x128xf32>
    %86 = arith.mulf %76, %51 : vector<8x128xf32>
    %87 = arith.addf %85, %86 : vector<8x128xf32>
    %c3_i32_33 = arith.constant 3 : i32
    %88 = arith.muli %arg1, %c3_i32_33 : i32
    %c1_i32 = arith.constant 1 : i32
    %89 = arith.addi %88, %c1_i32 : i32
    %c8_i32_34 = arith.constant 8 : i32
    %90 = arith.cmpi slt, %89, %c8_i32_34 : i32
    %91 = arith.select %90, %87, %51 : vector<8x128xf32>
    %c2 = arith.constant 2 : index
    %c0_35 = arith.constant 0 : index
    %c0_36 = arith.constant 0 : index
    %92 = vector.load %arg2[%c2, %c0_35, %c0_36] : memref<3x8x32xf32, #tpu.memory_space<vmem>>, vector<1x8x32xf32>
    %93 = vector.shape_cast %92 : vector<1x8x32xf32> to vector<8x32xf32>
    %cst_37 = arith.constant dense<0.000000e+00> : vector<8x384xf32>
    %94 = tpu.matmul %93, %3, %cst_37 {dimension_numbers = #tpu.dot_dimension_numbers<[1], [0], [0], [1], [0, 0, 1, 1], [], []>} : vector<8x32xf32>, vector<32x384xf32>, vector<8x384xf32> -> vector<8x384xf32>
    %95 = arith.addf %94, %7 : vector<8x384xf32>
    %cst_38 = arith.constant dense<0.000000e+00> : vector<8x384xf32>
    %96 = tpu.matmul %91, %4, %cst_38 {dimension_numbers = #tpu.dot_dimension_numbers<[1], [0], [0], [1], [0, 0, 1, 1], [], []>} : vector<8x128xf32>, vector<128x384xf32>, vector<8x384xf32> -> vector<8x384xf32>
    %97 = vector.extract_strided_slice %95 {offsets = [0, 0], sizes = [8, 128], strides = [1, 1]} : vector<8x384xf32> to vector<8x128xf32>
    %98 = vector.extract_strided_slice %96 {offsets = [0, 0], sizes = [8, 128], strides = [1, 1]} : vector<8x384xf32> to vector<8x128xf32>
    %99 = arith.addf %97, %98 : vector<8x128xf32>
    %cst_39 = arith.constant 5.000000e-01 : f32
    %100 = vector.broadcast %cst_39 : f32 to vector<8x128xf32>
    %101 = arith.mulf %100, %99 : vector<8x128xf32>
    %102 = math.tanh %101 : vector<8x128xf32>
    %cst_40 = arith.constant 5.000000e-01 : f32
    %103 = vector.broadcast %cst_40 : f32 to vector<8x128xf32>
    %104 = arith.mulf %103, %102 : vector<8x128xf32>
    %cst_41 = arith.constant 5.000000e-01 : f32
    %105 = vector.broadcast %cst_41 : f32 to vector<8x128xf32>
    %106 = arith.addf %104, %105 : vector<8x128xf32>
    %107 = vector.extract_strided_slice %95 {offsets = [0, 128], sizes = [8, 128], strides = [1, 1]} : vector<8x384xf32> to vector<8x128xf32>
    %108 = vector.extract_strided_slice %96 {offsets = [0, 128], sizes = [8, 128], strides = [1, 1]} : vector<8x384xf32> to vector<8x128xf32>
    %109 = arith.addf %107, %108 : vector<8x128xf32>
    %cst_42 = arith.constant 5.000000e-01 : f32
    %110 = vector.broadcast %cst_42 : f32 to vector<8x128xf32>
    %111 = arith.mulf %110, %109 : vector<8x128xf32>
    %112 = math.tanh %111 : vector<8x128xf32>
    %cst_43 = arith.constant 5.000000e-01 : f32
    %113 = vector.broadcast %cst_43 : f32 to vector<8x128xf32>
    %114 = arith.mulf %113, %112 : vector<8x128xf32>
    %cst_44 = arith.constant 5.000000e-01 : f32
    %115 = vector.broadcast %cst_44 : f32 to vector<8x128xf32>
    %116 = arith.addf %114, %115 : vector<8x128xf32>
    %117 = vector.extract_strided_slice %95 {offsets = [0, 256], sizes = [8, 128], strides = [1, 1]} : vector<8x384xf32> to vector<8x128xf32>
    %118 = vector.extract_strided_slice %96 {offsets = [0, 256], sizes = [8, 128], strides = [1, 1]} : vector<8x384xf32> to vector<8x128xf32>
    %119 = arith.addf %118, %10 : vector<8x128xf32>
    %120 = arith.mulf %106, %119 : vector<8x128xf32>
    %121 = arith.addf %117, %120 : vector<8x128xf32>
    %122 = math.tanh %121 : vector<8x128xf32>
    %cst_45 = arith.constant 1.000000e+00 : f32
    %123 = vector.broadcast %cst_45 : f32 to vector<8x128xf32>
    %124 = arith.subf %123, %116 : vector<8x128xf32>
    %125 = arith.mulf %124, %122 : vector<8x128xf32>
    %126 = arith.mulf %116, %91 : vector<8x128xf32>
    %127 = arith.addf %125, %126 : vector<8x128xf32>
    %c3_i32_46 = arith.constant 3 : i32
    %128 = arith.muli %arg1, %c3_i32_46 : i32
    %c2_i32 = arith.constant 2 : i32
    %129 = arith.addi %128, %c2_i32 : i32
    %c8_i32_47 = arith.constant 8 : i32
    %130 = arith.cmpi slt, %129, %c8_i32_47 : i32
    %131 = arith.select %130, %127, %91 : vector<8x128xf32>
    %c0_48 = arith.constant 0 : index
    %c0_49 = arith.constant 0 : index
    %132 = vector.load %arg7[%c0_48, %c0_49] : memref<8x128xf32, #tpu.memory_space<vmem>>, vector<8x128xf32>
    tpu.vector_store %arg7[%c0_48, %c0_49], %131 {strides = array<i32>} : memref<8x128xf32, #tpu.memory_space<vmem>>, vector<8x128xf32>,
    return
  }
  func.func @transform_0(%arg0: i32, %arg1: i32) -> (i32, i32, i32) {
    %c0_i32 = arith.constant 0 : i32
    %c0_i32_0 = arith.constant 0 : i32
    return %arg1, %arg0, %c0_i32 : i32, i32, i32
  }
  func.func @transform_1(%arg0: i32, %arg1: i32) -> (i32, i32) {
    %c0_i32 = arith.constant 0 : i32
    %c0_i32_0 = arith.constant 0 : i32
    %c0_i32_1 = arith.constant 0 : i32
    return %c0_i32, %c0_i32_0 : i32, i32
  }
  func.func @transform_2(%arg0: i32, %arg1: i32) -> (i32, i32) {
    %c0_i32 = arith.constant 0 : i32
    %c0_i32_0 = arith.constant 0 : i32
    %c0_i32_1 = arith.constant 0 : i32
    return %c0_i32, %c0_i32_0 : i32, i32
  }
  func.func @transform_3(%arg0: i32, %arg1: i32) -> (i32, i32) {
    %c0_i32 = arith.constant 0 : i32
    %c0_i32_0 = arith.constant 0 : i32
    %c0_i32_1 = arith.constant 0 : i32
    return %c0_i32, %c0_i32_0 : i32, i32
  }
  func.func @transform_4(%arg0: i32, %arg1: i32) -> (i32, i32) {
    %c0_i32 = arith.constant 0 : i32
    %c0_i32_0 = arith.constant 0 : i32
    %c0_i32_1 = arith.constant 0 : i32
    return %c0_i32, %c0_i32_0 : i32, i32
  }
  func.func @transform_5(%arg0: i32, %arg1: i32) -> (i32, i32) {
    %c0_i32 = arith.constant 0 : i32
    %c0_i32_0 = arith.constant 0 : i32
    return %arg0, %c0_i32 : i32, i32
  }
}

</mosaic_0001>

<llo_original>
// kernel: sent_classifier_forward.1
$region0: #{sent_classifier_forward.1}
  #allocation0 [shape = 'u32[]', space=smem, size = 0x4, offset = 0x4, fixed_abs, tag = 'smem constant byte address 0x4 - core index']
  #allocation1 [shape = 'u32[144,128]{1,0:T(1,128)}', space=vmem, size = 0x12000, scoped, tag = 'internal scratch']
  %s0 = inlined_call_operand.vmem [shape: f32[9,16,32], index: 0, kind: input, shape index: {}]
  %s1 = inlined_call_operand.vmem [shape: f32[32,384], index: 1, kind: input, shape index: {}]
  %s2 = inlined_call_operand.vmem [shape: f32[1,384], index: 2, kind: input, shape index: {}]
  %s3 = inlined_call_operand.vmem [shape: f32[128,384], index: 3, kind: input, shape index: {}]
  %s4 = inlined_call_operand.vmem [shape: f32[1,128], index: 4, kind: input, shape index: {}]
  %s5 = inlined_call_operand.vmem [shape: f32[16,128], index: 5, kind: output, shape index: {}]
  %s6 = sld [smem:[#allocation0]]
  $region95: #{sent_classifier_forward.1} parent=0
    _
  %s8 = ssub.s32 1, %s6
  %s9 = scalar_select 0, %s8, %s6
  $region1: #{sent_classifier_forward.1} parent=0
    #allocation2 [shape = 'u8[24576]{0}', space=vmem, size = 0x6000, scoped, tag = 'input window, operand 0']
    loop: start=0, step=1, limit=8
    $region2: #{sent_classifier_forward.1} parent=1 // loop_pre_header
      _
    $region3: #{sent_classifier_forward.1} parent=1 // loop_header
      %s11 = sphi 0, %s15
      %p12 = scmp.ge.s32.totalorder %s11, 8
      %s18 = sphi 0, %s30
      %s19 = sphi 0, %s26
      %s20 = sphi 0, %s18
      %s21 = sphi 0, %s19
      %s22 = sphi 0, %s20
      %s23 = sphi 0, %s21
      %s35 = sphi 0, %s37
      %s38 = sphi 0, %s35
      %s39 = sphi 0, %s38
      %s55 = sphi 0, %s39
      %s59 = sphi 0, %s59
      %s61 = sphi 0, %s59
      %s62 = sphi 0, %s61
      %s76 = sphi 0, %s62
      %s80 = sphi 0, %s80
      %s82 = sphi 0, %s80
      %s83 = sphi 0, %s82
      %s97 = sphi 0, %s83
      %s101 = sphi 0, %s101
      %s103 = sphi 0, %s101
      %s104 = sphi 0, %s103
      %s118 = sphi 0, %s104
      %s122 = sphi 0, %s122
      %s124 = sphi 0, %s122
      %s125 = sphi 0, %s124
      %s139 = sphi 0, %s125
      %s145 = sphi 0, %s147
      %s148 = sphi 0, %s145
      %s149 = sphi 0, %s148
      %s165 = sphi 0, %s149
    $region4: #{sent_classifier_forward.1} parent=1 // loop_header_branch
      %14 = sbr.rel (%p12) target = $region8
    $region5: #{sent_classifier_forward.1} parent=1 // loop_body
      %s16 = ssub.s32 %s11, 1
      %s17 = ssub.s32 %s11, 2
      %s24 = sadd.s32 1, %s19
      %p25 = scmp.ge.s32.totalorder %s24, 3
      %s26 = scalar_select %p25, 0, %s24
      %s27 = sadd.s32 1, %s18
      %s28 = scalar_select %p25, %s27, %s18
      %p29 = scmp.ge.s32.totalorder %s28, 2
      %s30 = scalar_select %p29, 0, %s28
      %s31 = ssub.s32 %s19, %s26
      %s32 = ssub.s32 %s18, %s30
      %s33 = sor.u32 %s31, %s32
      %p34 = scmp.eq.s32.totalorder %s33, 0
      %s36 = sadd.s32 %s35, 1
      %s37 = scalar_select %p34, %s35, %s36
      %p40 = pneg %p34
      %p41 = scmp.eq.s32.totalorder %s11, 5
      %p42 = por %p40, %p41
      %p43 = scmp.ne.s32.totalorder %s35, %s38
      %p44 = scmp.eq.s32.totalorder %s11, 0
      %p45 = por %p43, %p44
      %p46 = scmp.ne.s32.totalorder %s35, %s38
      %p47 = scmp.eq.s32.totalorder %s16, 5
      %p48 = por %p46, %p47
      %p49 = scmp.ne.s32.totalorder %s38, %s39
      %p50 = scmp.eq.s32.totalorder %s16, 0
      %p51 = por %p49, %p50
      %p52 = scmp.ne.s32.totalorder %s38, %s39
      %p53 = scmp.eq.s32.totalorder %s17, 5
      %p54 = por %p52, %p53
      %p56 = scmp.ne.s32.totalorder %s39, %s55
      %p57 = scmp.eq.s32.totalorder %s17, 0
      %p58 = por %p56, %p57
      %s60 = sadd.s32 %s59, 1
      %p63 = scmp.eq.s32.totalorder %s11, 5
      %p64 = scmp.ne.s32.totalorder %s59, %s61
      %p65 = scmp.eq.s32.totalorder %s11, 0
      %p66 = por %p64, %p65
      %p67 = scmp.ne.s32.totalorder %s59, %s61
      %p68 = scmp.eq.s32.totalorder %s16, 5
      %p69 = por %p67, %p68
      %p70 = scmp.ne.s32.totalorder %s61, %s62
      %p71 = scmp.eq.s32.totalorder %s16, 0
      %p72 = por %p70, %p71
      %p73 = scmp.ne.s32.totalorder %s61, %s62
      %p74 = scmp.eq.s32.totalorder %s17, 5
      %p75 = por %p73, %p74
      %p77 = scmp.ne.s32.totalorder %s62, %s76
      %p78 = scmp.eq.s32.totalorder %s17, 0
      %p79 = por %p77, %p78
      %s81 = sadd.s32 %s80, 1
      %p84 = scmp.eq.s32.totalorder %s11, 5
      %p85 = scmp.ne.s32.totalorder %s80, %s82
      %p86 = scmp.eq.s32.totalorder %s11, 0
      %p87 = por %p85, %p86
      %p88 = scmp.ne.s32.totalorder %s80, %s82
      %p89 = scmp.eq.s32.totalorder %s16, 5
      %p90 = por %p88, %p89
      %p91 = scmp.ne.s32.totalorder %s82, %s83
      %p92 = scmp.eq.s32.totalorder %s16, 0
      %p93 = por %p91, %p92
      %p94 = scmp.ne.s32.totalorder %s82, %s83
      %p95 = scmp.eq.s32.totalorder %s17, 5
      %p96 = por %p94, %p95
      %p98 = scmp.ne.s32.totalorder %s83, %s97
      %p99 = scmp.eq.s32.totalorder %s17, 0
      %p100 = por %p98, %p99
      %s102 = sadd.s32 %s101, 1
      %p105 = scmp.eq.s32.totalorder %s11, 5
      %p106 = scmp.ne.s32.totalorder %s101, %s103
      %p107 = scmp.eq.s32.totalorder %s11, 0
      %p108 = por %p106, %p107
      %p109 = scmp.ne.s32.totalorder %s101, %s103
      %p110 = scmp.eq.s32.totalorder %s16, 5
      %p111 = por %p109, %p110
      %p112 = scmp.ne.s32.totalorder %s103, %s104
      %p113 = scmp.eq.s32.totalorder %s16, 0
      %p114 = por %p112, %p113
      %p115 = scmp.ne.s32.totalorder %s103, %s104
      %p116 = scmp.eq.s32.totalorder %s17, 5
      %p117 = por %p115, %p116
      %p119 = scmp.ne.s32.totalorder %s104, %s118
      %p120 = scmp.eq.s32.totalorder %s17, 0
      %p121 = por %p119, %p120
      %s123 = sadd.s32 %s122, 1
      %p126 = scmp.eq.s32.totalorder %s11, 5
      %p127 = scmp.ne.s32.totalorder %s122, %s124
      %p128 = scmp.eq.s32.totalorder %s11, 0
      %p129 = por %p127, %p128
      %p130 = scmp.ne.s32.totalorder %s122, %s124
      %p131 = scmp.eq.s32.totalorder %s16, 5
      %p132 = por %p130, %p131
      %p133 = scmp.ne.s32.totalorder %s124, %s125
      %p134 = scmp.eq.s32.totalorder %s16, 0
      %p135 = por %p133, %p134
      %p136 = scmp.ne.s32.totalorder %s124, %s125
      %p137 = scmp.eq.s32.totalorder %s17, 5
      %p138 = por %p136, %p137
      %p140 = scmp.ne.s32.totalorder %s125, %s139
      %p141 = scmp.eq.s32.totalorder %s17, 0
      %p142 = por %p140, %p141
      %s143 = ssub.s32 %s18, %s30
      %p144 = scmp.eq.s32.totalorder %s143, 0
      %s146 = sadd.s32 %s145, 1
      %s147 = scalar_select %p144, %s145, %s146
      %p150 = pneg %p144
      %p151 = scmp.eq.s32.totalorder %s11, 5
      %p152 = por %p150, %p151
      %p153 = scmp.ne.s32.totalorder %s145, %s148
      %p154 = scmp.eq.s32.totalorder %s11, 0
      %p155 = por %p153, %p154
      %p156 = scmp.ne.s32.totalorder %s145, %s148
      %p157 = scmp.eq.s32.totalorder %s16, 5
      %p158 = por %p156, %p157
      %p159 = scmp.ne.s32.totalorder %s148, %s149
      %p160 = scmp.eq.s32.totalorder %s16, 0
      %p161 = por %p159, %p160
      %p162 = scmp.ne.s32.totalorder %s148, %s149
      %p163 = scmp.eq.s32.totalorder %s17, 5
      %p164 = por %p162, %p163
      %p166 = scmp.ne.s32.totalorder %s149, %s165
      %p167 = scmp.eq.s32.totalorder %s17, 0
      %p168 = por %p166, %p167
      %p169 = scmp.le.s32.totalorder 1, %s11
      %p170 = scmp.lt.s32.totalorder %s11, 7
      %p171 = pnand %p169, %p170
      %p172 = pneg %p171
      // Predicated region
      $region9: #{sent_classifier_forward.1} parent=5 // pred_check
        _
      $region10: #{sent_classifier_forward.1} parent=5 // pred_check_branch
        %174 = sbr.rel (%p171) target = $region12
      $region11: #{sent_classifier_forward.1} parent=5 // pred_region
        %s175 = ssub.s32 %s11, 1
        // Predicated region
        $region13: #{sent_classifier_forward.1} parent=11 // pred_check
          %p176 = pneg %p72
        $region14: #{sent_classifier_forward.1} parent=11 // pred_check_branch
          %178 = sbr.rel (%p176) target = $region16
        $region15: #{sent_classifier_forward.1} parent=11 // pred_region
          _
        $region16: #{sent_classifier_forward.1} parent=11 // pred_fallthru
          _
        // Predicated region
        $region17: #{sent_classifier_forward.1} parent=11 // pred_check
          %p179 = pneg %p93
        $region18: #{sent_classifier_forward.1} parent=11 // pred_check_branch
          %181 = sbr.rel (%p179) target = $region20
        $region19: #{sent_classifier_forward.1} parent=11 // pred_region
          _
        $region20: #{sent_classifier_forward.1} parent=11 // pred_fallthru
          _
        // Predicated region
        $region21: #{sent_classifier_forward.1} parent=11 // pred_check
          %p182 = pneg %p114
        $region22: #{sent_classifier_forward.1} parent=11 // pred_check_branch
          %184 = sbr.rel (%p182) target = $region24
        $region23: #{sent_classifier_forward.1} parent=11 // pred_region
          _
        $region24: #{sent_classifier_forward.1} parent=11 // pred_fallthru
          _
        // Predicated region
        $region25: #{sent_classifier_forward.1} parent=11 // pred_check
          %p185 = pneg %p135
        $region26: #{sent_classifier_forward.1} parent=11 // pred_check_branch
          %187 = sbr.rel (%p185) target = $region28
        $region27: #{sent_classifier_forward.1} parent=11 // pred_region
          _
        $region28: #{sent_classifier_forward.1} parent=11 // pred_fallthru
          _
      $region12: #{sent_classifier_forward.1} parent=5 // pred_fallthru
        _
      %p188 = scmp.lt.s32.totalorder %s11, 6
      // Predicated region
      $region29: #{sent_classifier_forward.1} parent=5 // pred_check
        %p189 = pneg %p188
      $region30: #{sent_classifier_forward.1} parent=5 // pred_check_branch
        %191 = sbr.rel (%p189) target = $region32
      $region31: #{sent_classifier_forward.1} parent=5 // pred_region
        // Predicated region
        $region33: #{sent_classifier_forward.1} parent=31 // pred_check
          %p192 = pneg %p45
        $region34: #{sent_classifier_forward.1} parent=31 // pred_check_branch
          %194 = sbr.rel (%p192) target = $region36
        $region35: #{sent_classifier_forward.1} parent=31 // pred_region
          %s195 = sand.u32 %s35, 1
          %s196 = sand.u32 %s35, 1
          %s197 = smul.addr %s196, 24
          %s198 = scalar_lea.vmem [#allocation2], %s197
          %s199 = smul.u32 3, %s19
          %s200 = smul.addr %s199, 2
          %s201 = sadd.s32 %s18, %s200
          %s202 = smul.addr %s201, 8
          %s203 = scalar_lea.vmem %s0, %s202
          // Predicated region
          $region37: #{sent_classifier_forward.1} parent=35 // pred_check
            _
          $region38: #{sent_classifier_forward.1} parent=35 // pred_check_branch
            %205 = sbr.rel (0) target = $region40
          $region39: #{sent_classifier_forward.1} parent=35 // pred_region
            // Predicated region
            $region41: #{sent_classifier_forward.1} parent=39 // pred_check
              _
            $region42: #{sent_classifier_forward.1} parent=39 // pred_check_branch
              %207 = sbr.rel (0) target = $region44
            $region43: #{sent_classifier_forward.1} parent=39 // pred_region
              // Predicated region
              $region56: #{sent_classifier_forward.1} parent=43 // pred_check
                _
              $region57: #{sent_classifier_forward.1} parent=43 // pred_check_branch
                %227 = sbr.rel (0) target = $region59
              $region58: #{sent_classifier_forward.1} parent=43 // pred_region
                loop: start=0, step=1, limit=1
                $region60: #{sent_classifier_forward.1} parent=58 // loop_pre_header
                  _
                $region61: #{sent_classifier_forward.1} parent=58 // loop_header
                  %s229 = sphi 0, %s233
                  %p230 = scmp.ge.s32.totalorder %s229, 1
                  %s234 = sphi %s203, %s203
                  %s235 = sphi %s198, %s198
                $region62: #{sent_classifier_forward.1} parent=58 // loop_header_branch
                  %232 = sbr.rel (%p230) target = $region66
                $region63: #{sent_classifier_forward.1} parent=58 // loop_body
                  %v236 = vld [vmem:[%s234] sm:$0xff]
                  %237 = vst [vmem:[%s235] sm:$0xff] %v236
                  %v238 = vld [vmem:[%s234 + $0x10] sm:$0xff]
                  %239 = vst [vmem:[%s235 + $0x8] sm:$0xff] %v238
                  %v240 = vld [vmem:[%s234 + $0x20] sm:$0xff]
                  %241 = vst [vmem:[%s235 + $0x10] sm:$0xff] %v240
                $region64: #{sent_classifier_forward.1} parent=58 // loop_footer
                  %s233 = sadd.s32 1, %s229
                $region65: #{sent_classifier_forward.1} parent=58 // loop_footer_branch
                  %228 = sbr.rel target = $region61
                $region66: #{sent_classifier_forward.1} parent=58 // loop_exit
                  _
              $region59: #{sent_classifier_forward.1} parent=43 // pred_fallthru
                _
              // Predicated region
              $region67: #{sent_classifier_forward.1} parent=43 // pred_check
                _
              $region68: #{sent_classifier_forward.1} parent=43 // pred_check_branch
                %243 = sbr.rel target = $region70
              $region69: #{sent_classifier_forward.1} parent=43 // pred_region
                _
              $region70: #{sent_classifier_forward.1} parent=43 // pred_fallthru
                _
            $region44: #{sent_classifier_forward.1} parent=39 // pred_fallthru
              _
            // Predicated region
            $region45: #{sent_classifier_forward.1} parent=39 // pred_check
              _
            $region46: #{sent_classifier_forward.1} parent=39 // pred_check_branch
              %209 = sbr.rel target = $region48
            $region47: #{sent_classifier_forward.1} parent=39 // pred_region
              %s211 = ssub.s32 256, 1
              loop: start=0, step=1, limit=1
              $region49: #{sent_classifier_forward.1} parent=47 // loop_pre_header
                _
              $region50: #{sent_classifier_forward.1} parent=47 // loop_header
                %s213 = sphi 0, %s217
                %p214 = scmp.ge.s32.totalorder %s213, 1
                %s218 = sphi %s203, %s203
                %s219 = sphi %s198, %s198
              $region51: #{sent_classifier_forward.1} parent=47 // loop_header_branch
                %216 = sbr.rel (%p214) target = $region55
              $region52: #{sent_classifier_forward.1} parent=47 // loop_body
                %v220 = vld [vmem:[%s218] sm:%s211]
                %221 = vst [vmem:[%s219] sm:%s211] %v220
                %v222 = vld [vmem:[%s218 + $0x10] sm:%s211]
                %223 = vst [vmem:[%s219 + $0x8] sm:%s211] %v222
                %v224 = vld [vmem:[%s218 + $0x20] sm:%s211]
                %225 = vst [vmem:[%s219 + $0x10] sm:%s211] %v224
              $region53: #{sent_classifier_forward.1} parent=47 // loop_footer
                %s217 = sadd.s32 1, %s213
              $region54: #{sent_classifier_forward.1} parent=47 // loop_footer_branch
                %212 = sbr.rel target = $region50
              $region55: #{sent_classifier_forward.1} parent=47 // loop_exit
                _
            $region48: #{sent_classifier_forward.1} parent=39 // pred_fallthru
              _
          $region40: #{sent_classifier_forward.1} parent=35 // pred_fallthru
            _
          %244 = vnop
        $region36: #{sent_classifier_forward.1} parent=31 // pred_fallthru
          _
      $region32: #{sent_classifier_forward.1} parent=5 // pred_fallthru
        _
      %p245 = scmp.le.s32.totalorder 1, %s11
      %p246 = scmp.lt.s32.totalorder %s11, 7
      %p247 = pnand %p245, %p246
      %p248 = pneg %p247
      // Predicated region
      $region71: #{sent_classifier_forward.1} parent=5 // pred_check
        _
      $region72: #{sent_classifier_forward.1} parent=5 // pred_check_branch
        %250 = sbr.rel (%p247) target = $region74
      $region73: #{sent_classifier_forward.1} parent=5 // pred_region
        %s251 = ssub.s32 %s11, 1
        %s252 = sand.u32 %s38, 1
        %s253 = sand.u32 %s38, 1
        %s254 = smul.addr %s253, 24
        %s255 = scalar_lea.vmem [#allocation2], %s254
        // Predicated region
        $region75: #{sent_classifier_forward.1} parent=73 // pred_check
          %p256 = pneg %p51
        $region76: #{sent_classifier_forward.1} parent=73 // pred_check_branch
          %258 = sbr.rel (%p256) target = $region78
        $region77: #{sent_classifier_forward.1} parent=73 // pred_region
          _
        $region78: #{sent_classifier_forward.1} parent=73 // pred_fallthru
          _
        %s259 = sand.u32 %s38, 1
        %s260 = sand.u32 %s38, 1
        %s261 = smul.addr %s260, 24
        %s262 = scalar_lea.vmem [#allocation2], %s261
        %p263 = pneg %p51
        %p264 = pneg %p48
        %p265 = pneg %p72
        %p266 = pneg %p69
        %p267 = pneg %p93
        %p268 = pneg %p90
        %p269 = pneg %p114
        %p270 = pneg %p111
        %p271 = pneg %p135
        %p272 = pneg %p132
        %p273 = pneg %p161
        %p274 = pneg %p158
        %p275 = scmp.lt.s32.totalorder %s20, 1
        %s276 = scalar_select %p275, %s20, 1
        %s277 = smul.addr %s276, 8
        %s278 = scalar_lea.vmem %s5, %s277
        %s279 = smul.u32 3, %s21
        %p280 = scmp.lt.s32.totalorder %s20, 1
        %s281 = scalar_select %p280, %s20, 1
        %s282 = smul.addr %s281, 8
        %s283 = scalar_lea.vmem %s5, %s282
        %p284 = scmp.eq.s32.totalorder %s21, 0
        // Predicated region
        $region79: #{sent_classifier_forward.1} parent=73 // pred_check
          %p285 = pneg %p284
        $region80: #{sent_classifier_forward.1} parent=73 // pred_check_branch
          %287 = sbr.rel (%p285) target = $region82
        $region81: #{sent_classifier_forward.1} parent=73 // pred_region
          %288 = vst [vmem:[%s283] sm:$0xff] 0.0
        $region82: #{sent_classifier_forward.1} parent=73 // pred_fallthru
          _
        %v289 = vld [vmem:[%s1] sm:$0xff]
        %v290 = vld [vmem:[%s1 + $0x8] sm:$0xff]
        %v291 = vld [vmem:[%s1 + $0x10] sm:$0xff]
        %v292 = vld [vmem:[%s1 + $0x18] sm:$0xff]
        %v293 = vld [vmem:[%s1 + $0x20] sm:$0xff]
        %v294 = vld [vmem:[%s1 + $0x28] sm:$0xff]
        %v295 = vld [vmem:[%s1 + $0x30] sm:$0xff]
        %v296 = vld [vmem:[%s1 + $0x38] sm:$0xff]
        %v297 = vld [vmem:[%s1 + $0x40] sm:$0xff]
        %v298 = vld [vmem:[%s1 + $0x48] sm:$0xff]
        %v299 = vld [vmem:[%s1 + $0x50] sm:$0xff]
        %v300 = vld [vmem:[%s1 + $0x58] sm:$0xff]
        %v301 = vld [vmem:[%s3] sm:$0xff]
        %v302 = vld [vmem:[%s3 + $0x8] sm:$0xff]
        %v303 = vld [vmem:[%s3 + $0x10] sm:$0xff]
        %v304 = vld [vmem:[%s3 + $0x18] sm:$0xff]
        %v305 = vld [vmem:[%s3 + $0x20] sm:$0xff]
        %v306 = vld [vmem:[%s3 + $0x28] sm:$0xff]
        %v307 = vld [vmem:[%s3 + $0x30] sm:$0xff]
        %v308 = vld [vmem:[%s3 + $0x38] sm:$0xff]
        %v309 = vld [vmem:[%s3 + $0x40] sm:$0xff]
        %v310 = vld [vmem:[%s3 + $0x48] sm:$0xff]
        %v311 = vld [vmem:[%s3 + $0x50] sm:$0xff]
        %v312 = vld [vmem:[%s3 + $0x58] sm:$0xff]
        %v313 = vld [vmem:[%s3 + $0x60] sm:$0xff]
        %v314 = vld [vmem:[%s3 + $0x68] sm:$0xff]
        %v315 = vld [vmem:[%s3 + $0x70] sm:$0xff]
        %v316 = vld [vmem:[%s3 + $0x78] sm:$0xff]
        %v317 = vld [vmem:[%s3 + $0x80] sm:$0xff]
        %v318 = vld [vmem:[%s3 + $0x88] sm:$0xff]
        %v319 = vld [vmem:[%s3 + $0x90] sm:$0xff]
        %v320 = vld [vmem:[%s3 + $0x98] sm:$0xff]
        %v321 = vld [vmem:[%s3 + $0xa0] sm:$0xff]
        %v322 = vld [vmem:[%s3 + $0xa8] sm:$0xff]
        %v323 = vld [vmem:[%s3 + $0xb0] sm:$0xff]
        %v324 = vld [vmem:[%s3 + $0xb8] sm:$0xff]
        %v325 = vld [vmem:[%s3 + $0xc0] sm:$0xff]
        %v326 = vld [vmem:[%s3 + $0xc8] sm:$0xff]
        %v327 = vld [vmem:[%s3 + $0xd0] sm:$0xff]
        %v328 = vld [vmem:[%s3 + $0xd8] sm:$0xff]
        %v329 = vld [vmem:[%s3 + $0xe0] sm:$0xff]
        %v330 = vld [vmem:[%s3 + $0xe8] sm:$0xff]
        %v331 = vld [vmem:[%s3 + $0xf0] sm:$0xff]
        %v332 = vld [vmem:[%s3 + $0xf8] sm:$0xff]
        %v333 = vld [vmem:[%s3 + $0x100] sm:$0xff]
        %v334 = vld [vmem:[%s3 + $0x108] sm:$0xff]
        %v335 = vld [vmem:[%s3 + $0x110] sm:$0xff]
        %v336 = vld [vmem:[%s3 + $0x118] sm:$0xff]
        %v337 = vld [vmem:[%s3 + $0x120] sm:$0xff]
        %v338 = vld [vmem:[%s3 + $0x128] sm:$0xff]
        %v339 = vld [vmem:[%s3 + $0x130] sm:$0xff]
        %v340 = vld [vmem:[%s3 + $0x138] sm:$0xff]
        %v341 = vld [vmem:[%s3 + $0x140] sm:$0xff]
        %v342 = vld [vmem:[%s3 + $0x148] sm:$0xff]
        %v343 = vld [vmem:[%s3 + $0x150] sm:$0xff]
        %v344 = vld [vmem:[%s3 + $0x158] sm:$0xff]
        %v345 = vld [vmem:[%s3 + $0x160] sm:$0xff]
        %v346 = vld [vmem:[%s3 + $0x168] sm:$0xff]
        %v347 = vld [vmem:[%s3 + $0x170] sm:$0xff]
        %v348 = vld [vmem:[%s3 + $0x178] sm:$0xff]
        %v349 = vld [vmem:[%s2] sm:$0x7]
        %v351 = vlaneseq
        %v352 = vshrl.u32 %v351, 7
        %v353 = vsub.s32 0, %v352
        %v354 = vrot.slane %v349, %v353
        %v355 = vlaneseq
        %v356 = vshrl.u32 %v355, 7
        %v357 = vsub.s32 1, %v356
        %v358 = vrot.slane %v349, %v357
        %v359 = vlaneseq
        %v360 = vshrl.u32 %v359, 7
        %v361 = vsub.s32 2, %v360
        %v362 = vrot.slane %v349, %v361
        %v366 = vld [vmem:[%s4] sm:$0x1]
        %v368 = vlaneseq
        %v369 = vshrl.u32 %v368, 7
        %v370 = vsub.s32 0, %v369
        %v371 = vrot.slane %v366, %v370
        %v373 = vld [vmem:[%s283] sm:$0xff]
        %v374 = vld [vmem:[%s255] sm:$0xff]
        %vm375 = vcmask 261120
        %v377 = vsel %vm375, %v374, 0
        %379 = vmatprep.subr.mxu0 0.0
        %380 = vmatpush1.msra.mxu0 0.0
        %381 = vmatprep.subr.mxu0 0.0
        %382 = vmatpush1.msra.mxu0 0.0
        %383 = vmatprep.subr.mxu0 0.0
        %384 = vmatpush1.msra.mxu0 0.0
        %385 = vmatprep.subr.mxu0 0.0
        %386 = vmatpush1.msra.mxu0 0.0
        %387 = vmatprep.subr.mxu0 0.0
        %388 = vmatpush1.msra.mxu0 0.0
        %389 = vmatprep.subr.mxu0 0.0
        %390 = vmatpush1.msra.mxu0 0.0
        %391 = vmatprep.subr.mxu0 0.0
        %392 = vmatpush1.msra.mxu0 0.0
        %393 = vmatprep.subr.mxu0 0.0
        %394 = vmatpush1.msra.mxu0 0.0
        %395 = vmatprep.subr.mxu0 0.0
        %396 = vmatpush1.msra.mxu0 0.0
        %397 = vmatprep.subr.mxu0 0.0
        %398 = vmatpush1.msra.mxu0 0.0
        %399 = vmatprep.subr.mxu0 0.0
        %400 = vmatpush1.msra.mxu0 0.0
        %401 = vmatprep.subr.mxu0 0.0
        %402 = vmatpush1.msra.mxu0 0.0
        %403 = vmatprep.subr.mxu0 %v299
        %404 = vmatpush1.msra.mxu0 %v298
        %405 = vmatprep.subr.mxu0 %v296
        %406 = vmatpush1.msra.mxu0 %v295
        %407 = vmatprep.subr.mxu0 %v293
        %408 = vmatpush1.msra.mxu0 %v292
        %409 = vmatprep.subr.mxu0 %v290
        %410 = vmatpush1.msra.mxu0 %v289
        %411 = vmatprep.subr.mxu0 0.0
        %412 = vmatpush2.msra.mxu0 0.0
        %413 = vmatprep.subr.mxu0 0.0
        %414 = vmatpush2.msra.mxu0 0.0
        %415 = vmatprep.subr.mxu0 0.0
        %416 = vmatpush2.msra.mxu0 0.0
        %417 = vmatprep.subr.mxu0 0.0
        %418 = vmatpush2.msra.mxu0 0.0
        %419 = vmatprep.subr.mxu0 0.0
        %420 = vmatpush2.msra.mxu0 0.0
        %421 = vmatprep.subr.mxu0 0.0
        %422 = vmatpush2.msra.mxu0 0.0
        %423 = vmatprep.subr.mxu0 0.0
        %424 = vmatpush2.msra.mxu0 0.0
        %425 = vmatprep.subr.mxu0 0.0
        %426 = vmatpush2.msra.mxu0 0.0
        %427 = vmatprep.subr.mxu0 0.0
        %428 = vmatpush2.msra.mxu0 0.0
        %429 = vmatprep.subr.mxu0 0.0
        %430 = vmatpush2.msra.mxu0 0.0
        %431 = vmatprep.subr.mxu0 0.0
        %432 = vmatpush2.msra.mxu0 0.0
        %433 = vmatprep.subr.mxu0 0.0
        %434 = vmatpush2.msra.mxu0 0.0
        %435 = vmatprep.subr.mxu0 0.0
        %436 = vmatpush2.msra.mxu0 0.0
        %437 = vmatprep.subr.mxu0 0.0
        %438 = vmatpush2.msra.mxu0 0.0
        %439 = vmatprep.subr.mxu0 0.0
        %440 = vmatpush2.msra.mxu0 0.0
        %441 = vmatprep.subr.mxu0 0.0
        %442 = vmatpush2.msra.mxu0 0.0
        %443 = vmatprep.mubr.f32.mxu0 0.0
        %444 = vmatmul.mubr.f32.gmra.mxu0 %v377
        %v445 = vpop.f32.mrf.mxu0
        %v446 = vadd.f32 %v354, %v445
        %v447 = vpop.f32.mrf.mxu0
        %v448 = vadd.f32 %v358, %v447
        %449 = vdwg.mxu0
        %450 = vmatprep.subr.mxu0 0.0
        %451 = vmatpush1.msra.mxu0 0.0
        %452 = vmatprep.subr.mxu0 0.0
        %453 = vmatpush1.msra.mxu0 0.0
        %454 = vmatprep.subr.mxu0 0.0
        %455 = vmatpush1.msra.mxu0 0.0
        %456 = vmatprep.subr.mxu0 0.0
        %457 = vmatpush1.msra.mxu0 0.0
        %458 = vmatprep.subr.mxu0 0.0
        %459 = vmatpush1.msra.mxu0 0.0
        %460 = vmatprep.subr.mxu0 0.0
        %461 = vmatpush1.msra.mxu0 0.0
        %462 = vmatprep.subr.mxu0 0.0
        %463 = vmatpush1.msra.mxu0 0.0
        %464 = vmatprep.subr.mxu0 0.0
        %465 = vmatpush1.msra.mxu0 0.0
        %466 = vmatprep.subr.mxu0 0.0
        %467 = vmatpush1.msra.mxu0 0.0
        %468 = vmatprep.subr.mxu0 0.0
        %469 = vmatpush1.msra.mxu0 0.0
        %470 = vmatprep.subr.mxu0 0.0
        %471 = vmatpush1.msra.mxu0 0.0
        %472 = vmatprep.subr.mxu0 0.0
        %473 = vmatpush1.msra.mxu0 0.0
        %474 = vmatprep.subr.mxu0 0.0
        %475 = vmatpush1.msra.mxu0 %v300
        %476 = vmatprep.subr.mxu0 0.0
        %477 = vmatpush1.msra.mxu0 %v297
        %478 = vmatprep.subr.mxu0 0.0
        %479 = vmatpush1.msra.mxu0 %v294
        %480 = vmatprep.subr.mxu0 0.0
        %481 = vmatpush1.msra.mxu0 %v291
        %482 = vmatprep.subr.mxu0 0.0
        %483 = vmatpush2.msra.mxu0 0.0
        %484 = vmatprep.subr.mxu0 0.0
        %485 = vmatpush2.msra.mxu0 0.0
        %486 = vmatprep.subr.mxu0 0.0
        %487 = vmatpush2.msra.mxu0 0.0
        %488 = vmatprep.subr.mxu0 0.0
        %489 = vmatpush2.msra.mxu0 0.0
        %490 = vmatprep.subr.mxu0 0.0
        %491 = vmatpush2.msra.mxu0 0.0
        %492 = vmatprep.subr.mxu0 0.0
        %493 = vmatpush2.msra.mxu0 0.0
        %494 = vmatprep.subr.mxu0 0.0
        %495 = vmatpush2.msra.mxu0 0.0
        %496 = vmatprep.subr.mxu0 0.0
        %497 = vmatpush2.msra.mxu0 0.0
        %498 = vmatprep.subr.mxu0 0.0
        %499 = vmatpush2.msra.mxu0 0.0
        %500 = vmatprep.subr.mxu0 0.0
        %501 = vmatpush2.msra.mxu0 0.0
        %502 = vmatprep.subr.mxu0 0.0
        %503 = vmatpush2.msra.mxu0 0.0
        %504 = vmatprep.subr.mxu0 0.0
        %505 = vmatpush2.msra.mxu0 0.0
        %506 = vmatprep.subr.mxu0 0.0
        %507 = vmatpush2.msra.mxu0 0.0
        %508 = vmatprep.subr.mxu0 0.0
        %509 = vmatpush2.msra.mxu0 0.0
        %510 = vmatprep.subr.mxu0 0.0
        %511 = vmatpush2.msra.mxu0 0.0
        %512 = vmatprep.subr.mxu0 0.0
        %513 = vmatpush2.msra.mxu0 0.0
        %514 = vmatprep.mubr.f32.mxu0 0.0
        %515 = vmatmul.mubr.f32.gmra.mxu0 %v377
        %v516 = vpop.f32.mrf.mxu0
        %v517 = vadd.f32 %v362, %v516
        %v518 = vpop.f32.mrf.mxu0
        %519 = vdwg.mxu0
        %520 = vmatprep.subr.mxu0 %v347
        %521 = vmatpush1.msra.mxu0 %v346
        %522 = vmatprep.subr.mxu0 %v344
        %523 = vmatpush1.msra.mxu0 %v343
        %524 = vmatprep.subr.mxu0 %v341
        %525 = vmatpush1.msra.mxu0 %v340
        %526 = vmatprep.subr.mxu0 %v338
        %527 = vmatpush1.msra.mxu0 %v337
        %528 = vmatprep.subr.mxu0 %v335
        %529 = vmatpush1.msra.mxu0 %v334
        %530 = vmatprep.subr.mxu0 %v332
        %531 = vmatpush1.msra.mxu0 %v331
        %532 = vmatprep.subr.mxu0 %v329
        %533 = vmatpush1.msra.mxu0 %v328
        %534 = vmatprep.subr.mxu0 %v326
        %535 = vmatpush1.msra.mxu0 %v325
        %536 = vmatprep.subr.mxu0 %v323
        %537 = vmatpush1.msra.mxu0 %v322
        %538 = vmatprep.subr.mxu0 %v320
        %539 = vmatpush1.msra.mxu0 %v319
        %540 = vmatprep.subr.mxu0 %v317
        %541 = vmatpush1.msra.mxu0 %v316
        %542 = vmatprep.subr.mxu0 %v314
        %543 = vmatpush1.msra.mxu0 %v313
        %544 = vmatprep.subr.mxu0 %v311
        %545 = vmatpush1.msra.mxu0 %v310
        %546 = vmatprep.subr.mxu0 %v308
        %547 = vmatpush1.msra.mxu0 %v307
        %548 = vmatprep.subr.mxu0 %v305
        %549 = vmatpush1.msra.mxu0 %v304
        %550 = vmatprep.subr.mxu0 %v302
        %551 = vmatpush1.msra.mxu0 %v301
        %552 = vmatprep.subr.mxu0 0.0
        %553 = vmatpush2.msra.mxu0 0.0
        %554 = vmatprep.subr.mxu0 0.0
        %555 = vmatpush2.msra.mxu0 0.0
        %556 = vmatprep.subr.mxu0 0.0
        %557 = vmatpush2.msra.mxu0 0.0
        %558 = vmatprep.subr.mxu0 0.0
        %559 = vmatpush2.msra.mxu0 0.0
        %560 = vmatprep.subr.mxu0 0.0
        %561 = vmatpush2.msra.mxu0 0.0
        %562 = vmatprep.subr.mxu0 0.0
        %563 = vmatpush2.msra.mxu0 0.0
        %564 = vmatprep.subr.mxu0 0.0
        %565 = vmatpush2.msra.mxu0 0.0
        %566 = vmatprep.subr.mxu0 0.0
        %567 = vmatpush2.msra.mxu0 0.0
        %568 = vmatprep.subr.mxu0 0.0
        %569 = vmatpush2.msra.mxu0 0.0
        %570 = vmatprep.subr.mxu0 0.0
        %571 = vmatpush2.msra.mxu0 0.0
        %572 = vmatprep.subr.mxu0 0.0
        %573 = vmatpush2.msra.mxu0 0.0
        %574 = vmatprep.subr.mxu0 0.0
        %575 = vmatpush2.msra.mxu0 0.0
        %576 = vmatprep.subr.mxu0 0.0
        %577 = vmatpush2.msra.mxu0 0.0
        %578 = vmatprep.subr.mxu0 0.0
        %579 = vmatpush2.msra.mxu0 0.0
        %580 = vmatprep.subr.mxu0 0.0
        %581 = vmatpush2.msra.mxu0 0.0
        %582 = vmatprep.subr.mxu0 0.0
        %583 = vmatpush2.msra.mxu0 0.0
        %584 = vmatprep.mubr.f32.mxu0 0.0
        %585 = vmatmul.mubr.f32.gmra.mxu0 %v373
        %v586 = vpop.f32.mrf.mxu0
        %v587 = vadd.f32 0.0, %v586
        %v588 = vpop.f32.mrf.mxu0
        %v589 = vadd.f32 0.0, %v588
        %590 = vdwg.mxu0
        %591 = vmatprep.subr.mxu0 0.0
        %592 = vmatpush1.msra.mxu0 %v348
        %593 = vmatprep.subr.mxu0 0.0
        %594 = vmatpush1.msra.mxu0 %v345
        %595 = vmatprep.subr.mxu0 0.0
        %596 = vmatpush1.msra.mxu0 %v342
        %597 = vmatprep.subr.mxu0 0.0
        %598 = vmatpush1.msra.mxu0 %v339
        %599 = vmatprep.subr.mxu0 0.0
        %600 = vmatpush1.msra.mxu0 %v336
        %601 = vmatprep.subr.mxu0 0.0
        %602 = vmatpush1.msra.mxu0 %v333
        %603 = vmatprep.subr.mxu0 0.0
        %604 = vmatpush1.msra.mxu0 %v330
        %605 = vmatprep.subr.mxu0 0.0
        %606 = vmatpush1.msra.mxu0 %v327
        %607 = vmatprep.subr.mxu0 0.0
        %608 = vmatpush1.msra.mxu0 %v324
        %609 = vmatprep.subr.mxu0 0.0
        %610 = vmatpush1.msra.mxu0 %v321
        %611 = vmatprep.subr.mxu0 0.0
        %612 = vmatpush1.msra.mxu0 %v318
        %613 = vmatprep.subr.mxu0 0.0
        %614 = vmatpush1.msra.mxu0 %v315
        %615 = vmatprep.subr.mxu0 0.0
        %616 = vmatpush1.msra.mxu0 %v312
        %617 = vmatprep.subr.mxu0 0.0
        %618 = vmatpush1.msra.mxu0 %v309
        %619 = vmatprep.subr.mxu0 0.0
        %620 = vmatpush1.msra.mxu0 %v306
        %621 = vmatprep.subr.mxu0 0.0
        %622 = vmatpush1.msra.mxu0 %v303
        %623 = vmatprep.subr.mxu0 0.0
        %624 = vmatpush2.msra.mxu0 0.0
        %625 = vmatprep.subr.mxu0 0.0
        %626 = vmatpush2.msra.mxu0 0.0
        %627 = vmatprep.subr.mxu0 0.0
        %628 = vmatpush2.msra.mxu0 0.0
        %629 = vmatprep.subr.mxu0 0.0
        %630 = vmatpush2.msra.mxu0 0.0
        %631 = vmatprep.subr.mxu0 0.0
        %632 = vmatpush2.msra.mxu0 0.0
        %633 = vmatprep.subr.mxu0 0.0
        %634 = vmatpush2.msra.mxu0 0.0
        %635 = vmatprep.subr.mxu0 0.0
        %636 = vmatpush2.msra.mxu0 0.0
        %637 = vmatprep.subr.mxu0 0.0
        %638 = vmatpush2.msra.mxu0 0.0
        %639 = vmatprep.subr.mxu0 0.0
        %640 = vmatpush2.msra.mxu0 0.0
        %641 = vmatprep.subr.mxu0 0.0
        %642 = vmatpush2.msra.mxu0 0.0
        %643 = vmatprep.subr.mxu0 0.0
        %644 = vmatpush2.msra.mxu0 0.0
        %645 = vmatprep.subr.mxu0 0.0
        %646 = vmatpush2.msra.mxu0 0.0
        %647 = vmatprep.subr.mxu0 0.0
        %648 = vmatpush2.msra.mxu0 0.0
        %649 = vmatprep.subr.mxu0 0.0
        %650 = vmatpush2.msra.mxu0 0.0
        %651 = vmatprep.subr.mxu0 0.0
        %652 = vmatpush2.msra.mxu0 0.0
        %653 = vmatprep.subr.mxu0 0.0
        %654 = vmatpush2.msra.mxu0 0.0
        %655 = vmatprep.mubr.f32.mxu0 0.0
        %656 = vmatmul.mubr.f32.gmra.mxu0 %v373
        %v657 = vpop.f32.mrf.mxu0
        %v658 = vadd.f32 0.0, %v657
        %v659 = vpop.f32.mrf.mxu0
        %660 = vdwg.mxu0
        %v661 = vadd.f32 %v446, %v587
        %v662 = vmul.f32 %v661, 0.5
        %v663 = vtanh.pop %v662
        %v664 = vmul.f32 %v663, 0.5
        %v665 = vadd.f32 %v664, 0.5
        %v666 = vadd.f32 %v448, %v589
        %v667 = vmul.f32 %v666, 0.5
        %v668 = vtanh.pop %v667
        %v669 = vmul.f32 %v668, 0.5
        %v670 = vadd.f32 %v669, 0.5
        %v671 = vadd.f32 %v658, %v371
        %v672 = vmul.f32 %v665, %v671
        %v673 = vadd.f32 %v517, %v672
        %v674 = vtanh.pop %v673
        %v675 = vsub.f32 1.0, %v670
        %v676 = vmul.f32 %v675, %v674
        %v677 = vmul.f32 %v670, %v373
        %v678 = vadd.f32 %v676, %v677
        %s679 = smul.u32 %s21, 3
        %p680 = scmp.lt.s32.totalorder %s679, 8
        %s681 = scalar_select %p680, 1, 0
        %v682 = vstv %s681
        %vm683 = vcmp.eq.s32.totalorder %v682, 1
        %v684 = vsel %vm683, %v678, %v373
        %s685 = scalar_lea.vmem %s255, 8 [#allocation2]
        %v686 = vld [vmem:[%s685] sm:$0xff]
        %v688 = vsel %vm375, %v686, 0
        %690 = vmatprep.subr.mxu0 0.0
        %691 = vmatpush1.msra.mxu0 0.0
        %692 = vmatprep.subr.mxu0 0.0
        %693 = vmatpush1.msra.mxu0 0.0
        %694 = vmatprep.subr.mxu0 0.0
        %695 = vmatpush1.msra.mxu0 0.0
        %696 = vmatprep.subr.mxu0 0.0
        %697 = vmatpush1.msra.mxu0 0.0
        %698 = vmatprep.subr.mxu0 0.0
        %699 = vmatpush1.msra.mxu0 0.0
        %700 = vmatprep.subr.mxu0 0.0
        %701 = vmatpush1.msra.mxu0 0.0
        %702 = vmatprep.subr.mxu0 0.0
        %703 = vmatpush1.msra.mxu0 0.0
        %704 = vmatprep.subr.mxu0 0.0
        %705 = vmatpush1.msra.mxu0 0.0
        %706 = vmatprep.subr.mxu0 0.0
        %707 = vmatpush1.msra.mxu0 0.0
        %708 = vmatprep.subr.mxu0 0.0
        %709 = vmatpush1.msra.mxu0 0.0
        %710 = vmatprep.subr.mxu0 0.0
        %711 = vmatpush1.msra.mxu0 0.0
        %712 = vmatprep.subr.mxu0 0.0
        %713 = vmatpush1.msra.mxu0 0.0
        %714 = vmatprep.subr.mxu0 %v299
        %715 = vmatpush1.msra.mxu0 %v298
        %716 = vmatprep.subr.mxu0 %v296
        %717 = vmatpush1.msra.mxu0 %v295
        %718 = vmatprep.subr.mxu0 %v293
        %719 = vmatpush1.msra.mxu0 %v292
        %720 = vmatprep.subr.mxu0 %v290
        %721 = vmatpush1.msra.mxu0 %v289
        %722 = vmatprep.subr.mxu0 0.0
        %723 = vmatpush2.msra.mxu0 0.0
        %724 = vmatprep.subr.mxu0 0.0
        %725 = vmatpush2.msra.mxu0 0.0
        %726 = vmatprep.subr.mxu0 0.0
        %727 = vmatpush2.msra.mxu0 0.0
        %728 = vmatprep.subr.mxu0 0.0
        %729 = vmatpush2.msra.mxu0 0.0
        %730 = vmatprep.subr.mxu0 0.0
        %731 = vmatpush2.msra.mxu0 0.0
        %732 = vmatprep.subr.mxu0 0.0
        %733 = vmatpush2.msra.mxu0 0.0
        %734 = vmatprep.subr.mxu0 0.0
        %735 = vmatpush2.msra.mxu0 0.0
        %736 = vmatprep.subr.mxu0 0.0
        %737 = vmatpush2.msra.mxu0 0.0
        %738 = vmatprep.subr.mxu0 0.0
        %739 = vmatpush2.msra.mxu0 0.0
        %740 = vmatprep.subr.mxu0 0.0
        %741 = vmatpush2.msra.mxu0 0.0
        %742 = vmatprep.subr.mxu0 0.0
        %743 = vmatpush2.msra.mxu0 0.0
        %744 = vmatprep.subr.mxu0 0.0
        %745 = vmatpush2.msra.mxu0 0.0
        %746 = vmatprep.subr.mxu0 0.0
        %747 = vmatpush2.msra.mxu0 0.0
        %748 = vmatprep.subr.mxu0 0.0
        %749 = vmatpush2.msra.mxu0 0.0
        %750 = vmatprep.subr.mxu0 0.0
        %751 = vmatpush2.msra.mxu0 0.0
        %752 = vmatprep.subr.mxu0 0.0
        %753 = vmatpush2.msra.mxu0 0.0
        %754 = vmatprep.mubr.f32.mxu0 0.0
        %755 = vmatmul.mubr.f32.gmra.mxu0 %v688
        %v756 = vpop.f32.mrf.mxu0
        %v757 = vadd.f32 %v354, %v756
        %v758 = vpop.f32.mrf.mxu0
        %v759 = vadd.f32 %v358, %v758
        %760 = vdwg.mxu0
        %761 = vmatprep.subr.mxu0 0.0
        %762 = vmatpush1.msra.mxu0 0.0
        %763 = vmatprep.subr.mxu0 0.0
        %764 = vmatpush1.msra.mxu0 0.0
        %765 = vmatprep.subr.mxu0 0.0
        %766 = vmatpush1.msra.mxu0 0.0
        %767 = vmatprep.subr.mxu0 0.0
        %768 = vmatpush1.msra.mxu0 0.0
        %769 = vmatprep.subr.mxu0 0.0
        %770 = vmatpush1.msra.mxu0 0.0
        %771 = vmatprep.subr.mxu0 0.0
        %772 = vmatpush1.msra.mxu0 0.0
        %773 = vmatprep.subr.mxu0 0.0
        %774 = vmatpush1.msra.mxu0 0.0
        %775 = vmatprep.subr.mxu0 0.0
        %776 = vmatpush1.msra.mxu0 0.0
        %777 = vmatprep.subr.mxu0 0.0
        %778 = vmatpush1.msra.mxu0 0.0
        %779 = vmatprep.subr.mxu0 0.0
        %780 = vmatpush1.msra.mxu0 0.0
        %781 = vmatprep.subr.mxu0 0.0
        %782 = vmatpush1.msra.mxu0 0.0
        %783 = vmatprep.subr.mxu0 0.0
        %784 = vmatpush1.msra.mxu0 0.0
        %785 = vmatprep.subr.mxu0 0.0
        %786 = vmatpush1.msra.mxu0 %v300
        %787 = vmatprep.subr.mxu0 0.0
        %788 = vmatpush1.msra.mxu0 %v297
        %789 = vmatprep.subr.mxu0 0.0
        %790 = vmatpush1.msra.mxu0 %v294
        %791 = vmatprep.subr.mxu0 0.0
        %792 = vmatpush1.msra.mxu0 %v291
        %793 = vmatprep.subr.mxu0 0.0
        %794 = vmatpush2.msra.mxu0 0.0
        %795 = vmatprep.subr.mxu0 0.0
        %796 = vmatpush2.msra.mxu0 0.0
        %797 = vmatprep.subr.mxu0 0.0
        %798 = vmatpush2.msra.mxu0 0.0
        %799 = vmatprep.subr.mxu0 0.0
        %800 = vmatpush2.msra.mxu0 0.0
        %801 = vmatprep.subr.mxu0 0.0
        %802 = vmatpush2.msra.mxu0 0.0
        %803 = vmatprep.subr.mxu0 0.0
        %804 = vmatpush2.msra.mxu0 0.0
        %805 = vmatprep.subr.mxu0 0.0
        %806 = vmatpush2.msra.mxu0 0.0
        %807 = vmatprep.subr.mxu0 0.0
        %808 = vmatpush2.msra.mxu0 0.0
        %809 = vmatprep.subr.mxu0 0.0
        %810 = vmatpush2.msra.mxu0 0.0
        %811 = vmatprep.subr.mxu0 0.0
        %812 = vmatpush2.msra.mxu0 0.0
        %813 = vmatprep.subr.mxu0 0.0
        %814 = vmatpush2.msra.mxu0 0.0
        %815 = vmatprep.subr.mxu0 0.0
        %816 = vmatpush2.msra.mxu0 0.0
        %817 = vmatprep.subr.mxu0 0.0
        %818 = vmatpush2.msra.mxu0 0.0
        %819 = vmatprep.subr.mxu0 0.0
        %820 = vmatpush2.msra.mxu0 0.0
        %821 = vmatprep.subr.mxu0 0.0
        %822 = vmatpush2.msra.mxu0 0.0
        %823 = vmatprep.subr.mxu0 0.0
        %824 = vmatpush2.msra.mxu0 0.0
        %825 = vmatprep.mubr.f32.mxu0 0.0
        %826 = vmatmul.mubr.f32.gmra.mxu0 %v688
        %v827 = vpop.f32.mrf.mxu0
        %v828 = vadd.f32 %v362, %v827
        %v829 = vpop.f32.mrf.mxu0
        %830 = vdwg.mxu0
        %831 = vmatprep.subr.mxu0 %v347
        %832 = vmatpush1.msra.mxu0 %v346
        %833 = vmatprep.subr.mxu0 %v344
        %834 = vmatpush1.msra.mxu0 %v343
        %835 = vmatprep.subr.mxu0 %v341
        %836 = vmatpush1.msra.mxu0 %v340
        %837 = vmatprep.subr.mxu0 %v338
        %838 = vmatpush1.msra.mxu0 %v337
        %839 = vmatprep.subr.mxu0 %v335
        %840 = vmatpush1.msra.mxu0 %v334
        %841 = vmatprep.subr.mxu0 %v332
        %842 = vmatpush1.msra.mxu0 %v331
        %843 = vmatprep.subr.mxu0 %v329
        %844 = vmatpush1.msra.mxu0 %v328
        %845 = vmatprep.subr.mxu0 %v326
        %846 = vmatpush1.msra.mxu0 %v325
        %847 = vmatprep.subr.mxu0 %v323
        %848 = vmatpush1.msra.mxu0 %v322
        %849 = vmatprep.subr.mxu0 %v320
        %850 = vmatpush1.msra.mxu0 %v319
        %851 = vmatprep.subr.mxu0 %v317
        %852 = vmatpush1.msra.mxu0 %v316
        %853 = vmatprep.subr.mxu0 %v314
        %854 = vmatpush1.msra.mxu0 %v313
        %855 = vmatprep.subr.mxu0 %v311
        %856 = vmatpush1.msra.mxu0 %v310
        %857 = vmatprep.subr.mxu0 %v308
        %858 = vmatpush1.msra.mxu0 %v307
        %859 = vmatprep.subr.mxu0 %v305
        %860 = vmatpush1.msra.mxu0 %v304
        %861 = vmatprep.subr.mxu0 %v302
        %862 = vmatpush1.msra.mxu0 %v301
        %863 = vmatprep.subr.mxu0 0.0
        %864 = vmatpush2.msra.mxu0 0.0
        %865 = vmatprep.subr.mxu0 0.0
        %866 = vmatpush2.msra.mxu0 0.0
        %867 = vmatprep.subr.mxu0 0.0
        %868 = vmatpush2.msra.mxu0 0.0
        %869 = vmatprep.subr.mxu0 0.0
        %870 = vmatpush2.msra.mxu0 0.0
        %871 = vmatprep.subr.mxu0 0.0
        %872 = vmatpush2.msra.mxu0 0.0
        %873 = vmatprep.subr.mxu0 0.0
        %874 = vmatpush2.msra.mxu0 0.0
        %875 = vmatprep.subr.mxu0 0.0
        %876 = vmatpush2.msra.mxu0 0.0
        %877 = vmatprep.subr.mxu0 0.0
        %878 = vmatpush2.msra.mxu0 0.0
        %879 = vmatprep.subr.mxu0 0.0
        %880 = vmatpush2.msra.mxu0 0.0
        %881 = vmatprep.subr.mxu0 0.0
        %882 = vmatpush2.msra.mxu0 0.0
        %883 = vmatprep.subr.mxu0 0.0
        %884 = vmatpush2.msra.mxu0 0.0
        %885 = vmatprep.subr.mxu0 0.0
        %886 = vmatpush2.msra.mxu0 0.0
        %887 = vmatprep.subr.mxu0 0.0
        %888 = vmatpush2.msra.mxu0 0.0
        %889 = vmatprep.subr.mxu0 0.0
        %890 = vmatpush2.msra.mxu0 0.0
        %891 = vmatprep.subr.mxu0 0.0
        %892 = vmatpush2.msra.mxu0 0.0
        %893 = vmatprep.subr.mxu0 0.0
        %894 = vmatpush2.msra.mxu0 0.0
        %895 = vmatprep.mubr.f32.mxu0 0.0
        %896 = vmatmul.mubr.f32.gmra.mxu0 %v684
        %v897 = vpop.f32.mrf.mxu0
        %v898 = vadd.f32 0.0, %v897
        %v899 = vpop.f32.mrf.mxu0
        %v900 = vadd.f32 0.0, %v899
        %901 = vdwg.mxu0
        %902 = vmatprep.subr.mxu0 0.0
        %903 = vmatpush1.msra.mxu0 %v348
        %904 = vmatprep.subr.mxu0 0.0
        %905 = vmatpush1.msra.mxu0 %v345
        %906 = vmatprep.subr.mxu0 0.0
        %907 = vmatpush1.msra.mxu0 %v342
        %908 = vmatprep.subr.mxu0 0.0
        %909 = vmatpush1.msra.mxu0 %v339
        %910 = vmatprep.subr.mxu0 0.0
        %911 = vmatpush1.msra.mxu0 %v336
        %912 = vmatprep.subr.mxu0 0.0
        %913 = vmatpush1.msra.mxu0 %v333
        %914 = vmatprep.subr.mxu0 0.0
        %915 = vmatpush1.msra.mxu0 %v330
        %916 = vmatprep.subr.mxu0 0.0
        %917 = vmatpush1.msra.mxu0 %v327
        %918 = vmatprep.subr.mxu0 0.0
        %919 = vmatpush1.msra.mxu0 %v324
        %920 = vmatprep.subr.mxu0 0.0
        %921 = vmatpush1.msra.mxu0 %v321
        %922 = vmatprep.subr.mxu0 0.0
        %923 = vmatpush1.msra.mxu0 %v318
        %924 = vmatprep.subr.mxu0 0.0
        %925 = vmatpush1.msra.mxu0 %v315
        %926 = vmatprep.subr.mxu0 0.0
        %927 = vmatpush1.msra.mxu0 %v312
        %928 = vmatprep.subr.mxu0 0.0
        %929 = vmatpush1.msra.mxu0 %v309
        %930 = vmatprep.subr.mxu0 0.0
        %931 = vmatpush1.msra.mxu0 %v306
        %932 = vmatprep.subr.mxu0 0.0
        %933 = vmatpush1.msra.mxu0 %v303
        %934 = vmatprep.subr.mxu0 0.0
        %935 = vmatpush2.msra.mxu0 0.0
        %936 = vmatprep.subr.mxu0 0.0
        %937 = vmatpush2.msra.mxu0 0.0
        %938 = vmatprep.subr.mxu0 0.0
        %939 = vmatpush2.msra.mxu0 0.0
        %940 = vmatprep.subr.mxu0 0.0
        %941 = vmatpush2.msra.mxu0 0.0
        %942 = vmatprep.subr.mxu0 0.0
        %943 = vmatpush2.msra.mxu0 0.0
        %944 = vmatprep.subr.mxu0 0.0
        %945 = vmatpush2.msra.mxu0 0.0
        %946 = vmatprep.subr.mxu0 0.0
        %947 = vmatpush2.msra.mxu0 0.0
        %948 = vmatprep.subr.mxu0 0.0
        %949 = vmatpush2.msra.mxu0 0.0
        %950 = vmatprep.subr.mxu0 0.0
        %951 = vmatpush2.msra.mxu0 0.0
        %952 = vmatprep.subr.mxu0 0.0
        %953 = vmatpush2.msra.mxu0 0.0
        %954 = vmatprep.subr.mxu0 0.0
        %955 = vmatpush2.msra.mxu0 0.0
        %956 = vmatprep.subr.mxu0 0.0
        %957 = vmatpush2.msra.mxu0 0.0
        %958 = vmatprep.subr.mxu0 0.0
        %959 = vmatpush2.msra.mxu0 0.0
        %960 = vmatprep.subr.mxu0 0.0
        %961 = vmatpush2.msra.mxu0 0.0
        %962 = vmatprep.subr.mxu0 0.0
        %963 = vmatpush2.msra.mxu0 0.0
        %964 = vmatprep.subr.mxu0 0.0
        %965 = vmatpush2.msra.mxu0 0.0
        %966 = vmatprep.mubr.f32.mxu0 0.0
        %967 = vmatmul.mubr.f32.gmra.mxu0 %v684
        %v968 = vpop.f32.mrf.mxu0
        %v969 = vadd.f32 0.0, %v968
        %v970 = vpop.f32.mrf.mxu0
        %971 = vdwg.mxu0
        %v972 = vadd.f32 %v757, %v898
        %v973 = vmul.f32 %v972, 0.5
        %v974 = vtanh.pop %v973
        %v975 = vmul.f32 %v974, 0.5
        %v976 = vadd.f32 %v975, 0.5
        %v977 = vadd.f32 %v759, %v900
        %v978 = vmul.f32 %v977, 0.5
        %v979 = vtanh.pop %v978
        %v980 = vmul.f32 %v979, 0.5
        %v981 = vadd.f32 %v980, 0.5
        %v982 = vadd.f32 %v969, %v371
        %v983 = vmul.f32 %v976, %v982
        %v984 = vadd.f32 %v828, %v983
        %v985 = vtanh.pop %v984
        %v986 = vsub.f32 1.0, %v981
        %v987 = vmul.f32 %v986, %v985
        %v988 = vmul.f32 %v981, %v684
        %v989 = vadd.f32 %v987, %v988
        %s990 = sadd.s32 %s679, 1
        %p991 = scmp.lt.s32.totalorder %s990, 8
        %s992 = scalar_select %p991, 1, 0
        %v993 = vstv %s992
        %vm994 = vcmp.eq.s32.totalorder %v993, 1
        %v995 = vsel %vm994, %v989, %v684
        %s996 = scalar_lea.vmem %s255, 16 [#allocation2]
        %v997 = vld [vmem:[%s996] sm:$0xff]
        %v999 = vsel %vm375, %v997, 0
        %1001 = vmatprep.subr.mxu0 0.0
        %1002 = vmatpush1.msra.mxu0 0.0
        %1003 = vmatprep.subr.mxu0 0.0
        %1004 = vmatpush1.msra.mxu0 0.0
        %1005 = vmatprep.subr.mxu0 0.0
        %1006 = vmatpush1.msra.mxu0 0.0
        %1007 = vmatprep.subr.mxu0 0.0
        %1008 = vmatpush1.msra.mxu0 0.0
        %1009 = vmatprep.subr.mxu0 0.0
        %1010 = vmatpush1.msra.mxu0 0.0
        %1011 = vmatprep.subr.mxu0 0.0
        %1012 = vmatpush1.msra.mxu0 0.0
        %1013 = vmatprep.subr.mxu0 0.0
        %1014 = vmatpush1.msra.mxu0 0.0
        %1015 = vmatprep.subr.mxu0 0.0
        %1016 = vmatpush1.msra.mxu0 0.0
        %1017 = vmatprep.subr.mxu0 0.0
        %1018 = vmatpush1.msra.mxu0 0.0
        %1019 = vmatprep.subr.mxu0 0.0
        %1020 = vmatpush1.msra.mxu0 0.0
        %1021 = vmatprep.subr.mxu0 0.0
        %1022 = vmatpush1.msra.mxu0 0.0
        %1023 = vmatprep.subr.mxu0 0.0
        %1024 = vmatpush1.msra.mxu0 0.0
        %1025 = vmatprep.subr.mxu0 %v299
        %1026 = vmatpush1.msra.mxu0 %v298
        %1027 = vmatprep.subr.mxu0 %v296
        %1028 = vmatpush1.msra.mxu0 %v295
        %1029 = vmatprep.subr.mxu0 %v293
        %1030 = vmatpush1.msra.mxu0 %v292
        %1031 = vmatprep.subr.mxu0 %v290
        %1032 = vmatpush1.msra.mxu0 %v289
        %1033 = vmatprep.subr.mxu0 0.0
        %1034 = vmatpush2.msra.mxu0 0.0
        %1035 = vmatprep.subr.mxu0 0.0
        %1036 = vmatpush2.msra.mxu0 0.0
        %1037 = vmatprep.subr.mxu0 0.0
        %1038 = vmatpush2.msra.mxu0 0.0
        %1039 = vmatprep.subr.mxu0 0.0
        %1040 = vmatpush2.msra.mxu0 0.0
        %1041 = vmatprep.subr.mxu0 0.0
        %1042 = vmatpush2.msra.mxu0 0.0
        %1043 = vmatprep.subr.mxu0 0.0
        %1044 = vmatpush2.msra.mxu0 0.0
        %1045 = vmatprep.subr.mxu0 0.0
        %1046 = vmatpush2.msra.mxu0 0.0
        %1047 = vmatprep.subr.mxu0 0.0
        %1048 = vmatpush2.msra.mxu0 0.0
        %1049 = vmatprep.subr.mxu0 0.0
        %1050 = vmatpush2.msra.mxu0 0.0
        %1051 = vmatprep.subr.mxu0 0.0
        %1052 = vmatpush2.msra.mxu0 0.0
        %1053 = vmatprep.subr.mxu0 0.0
        %1054 = vmatpush2.msra.mxu0 0.0
        %1055 = vmatprep.subr.mxu0 0.0
        %1056 = vmatpush2.msra.mxu0 0.0
        %1057 = vmatprep.subr.mxu0 0.0
        %1058 = vmatpush2.msra.mxu0 0.0
        %1059 = vmatprep.subr.mxu0 0.0
        %1060 = vmatpush2.msra.mxu0 0.0
        %1061 = vmatprep.subr.mxu0 0.0
        %1062 = vmatpush2.msra.mxu0 0.0
        %1063 = vmatprep.subr.mxu0 0.0
        %1064 = vmatpush2.msra.mxu0 0.0
        %1065 = vmatprep.mubr.f32.mxu0 0.0
        %1066 = vmatmul.mubr.f32.gmra.mxu0 %v999
        %v1067 = vpop.f32.mrf.mxu0
        %v1068 = vadd.f32 %v354, %v1067
        %v1069 = vpop.f32.mrf.mxu0
        %v1070 = vadd.f32 %v358, %v1069
        %1071 = vdwg.mxu0
        %1072 = vmatprep.subr.mxu0 0.0
        %1073 = vmatpush1.msra.mxu0 0.0
        %1074 = vmatprep.subr.mxu0 0.0
        %1075 = vmatpush1.msra.mxu0 0.0
        %1076 = vmatprep.subr.mxu0 0.0
        %1077 = vmatpush1.msra.mxu0 0.0
        %1078 = vmatprep.subr.mxu0 0.0
        %1079 = vmatpush1.msra.mxu0 0.0
        %1080 = vmatprep.subr.mxu0 0.0
        %1081 = vmatpush1.msra.mxu0 0.0
        %1082 = vmatprep.subr.mxu0 0.0
        %1083 = vmatpush1.msra.mxu0 0.0
        %1084 = vmatprep.subr.mxu0 0.0
        %1085 = vmatpush1.msra.mxu0 0.0
        %1086 = vmatprep.subr.mxu0 0.0
        %1087 = vmatpush1.msra.mxu0 0.0
        %1088 = vmatprep.subr.mxu0 0.0
        %1089 = vmatpush1.msra.mxu0 0.0
        %1090 = vmatprep.subr.mxu0 0.0
        %1091 = vmatpush1.msra.mxu0 0.0
        %1092 = vmatprep.subr.mxu0 0.0
        %1093 = vmatpush1.msra.mxu0 0.0
        %1094 = vmatprep.subr.mxu0 0.0
        %1095 = vmatpush1.msra.mxu0 0.0
        %1096 = vmatprep.subr.mxu0 0.0
        %1097 = vmatpush1.msra.mxu0 %v300
        %1098 = vmatprep.subr.mxu0 0.0
        %1099 = vmatpush1.msra.mxu0 %v297
        %1100 = vmatprep.subr.mxu0 0.0
        %1101 = vmatpush1.msra.mxu0 %v294
        %1102 = vmatprep.subr.mxu0 0.0
        %1103 = vmatpush1.msra.mxu0 %v291
        %1104 = vmatprep.subr.mxu0 0.0
        %1105 = vmatpush2.msra.mxu0 0.0
        %1106 = vmatprep.subr.mxu0 0.0
        %1107 = vmatpush2.msra.mxu0 0.0
        %1108 = vmatprep.subr.mxu0 0.0
        %1109 = vmatpush2.msra.mxu0 0.0
        %1110 = vmatprep.subr.mxu0 0.0
        %1111 = vmatpush2.msra.mxu0 0.0
        %1112 = vmatprep.subr.mxu0 0.0
        %1113 = vmatpush2.msra.mxu0 0.0
        %1114 = vmatprep.subr.mxu0 0.0
        %1115 = vmatpush2.msra.mxu0 0.0
        %1116 = vmatprep.subr.mxu0 0.0
        %1117 = vmatpush2.msra.mxu0 0.0
        %1118 = vmatprep.subr.mxu0 0.0
        %1119 = vmatpush2.msra.mxu0 0.0
        %1120 = vmatprep.subr.mxu0 0.0
        %1121 = vmatpush2.msra.mxu0 0.0
        %1122 = vmatprep.subr.mxu0 0.0
        %1123 = vmatpush2.msra.mxu0 0.0
        %1124 = vmatprep.subr.mxu0 0.0
        %1125 = vmatpush2.msra.mxu0 0.0
        %1126 = vmatprep.subr.mxu0 0.0
        %1127 = vmatpush2.msra.mxu0 0.0
        %1128 = vmatprep.subr.mxu0 0.0
        %1129 = vmatpush2.msra.mxu0 0.0
        %1130 = vmatprep.subr.mxu0 0.0
        %1131 = vmatpush2.msra.mxu0 0.0
        %1132 = vmatprep.subr.mxu0 0.0
        %1133 = vmatpush2.msra.mxu0 0.0
        %1134 = vmatprep.subr.mxu0 0.0
        %1135 = vmatpush2.msra.mxu0 0.0
        %1136 = vmatprep.mubr.f32.mxu0 0.0
        %1137 = vmatmul.mubr.f32.gmra.mxu0 %v999
        %v1138 = vpop.f32.mrf.mxu0
        %v1139 = vadd.f32 %v362, %v1138
        %v1140 = vpop.f32.mrf.mxu0
        %1141 = vdwg.mxu0
        %1142 = vmatprep.subr.mxu0 %v347
        %1143 = vmatpush1.msra.mxu0 %v346
        %1144 = vmatprep.subr.mxu0 %v344
        %1145 = vmatpush1.msra.mxu0 %v343
        %1146 = vmatprep.subr.mxu0 %v341
        %1147 = vmatpush1.msra.mxu0 %v340
        %1148 = vmatprep.subr.mxu0 %v338
        %1149 = vmatpush1.msra.mxu0 %v337
        %1150 = vmatprep.subr.mxu0 %v335
        %1151 = vmatpush1.msra.mxu0 %v334
        %1152 = vmatprep.subr.mxu0 %v332
        %1153 = vmatpush1.msra.mxu0 %v331
        %1154 = vmatprep.subr.mxu0 %v329
        %1155 = vmatpush1.msra.mxu0 %v328
        %1156 = vmatprep.subr.mxu0 %v326
        %1157 = vmatpush1.msra.mxu0 %v325
        %1158 = vmatprep.subr.mxu0 %v323
        %1159 = vmatpush1.msra.mxu0 %v322
        %1160 = vmatprep.subr.mxu0 %v320
        %1161 = vmatpush1.msra.mxu0 %v319
        %1162 = vmatprep.subr.mxu0 %v317
        %1163 = vmatpush1.msra.mxu0 %v316
        %1164 = vmatprep.subr.mxu0 %v314
        %1165 = vmatpush1.msra.mxu0 %v313
        %1166 = vmatprep.subr.mxu0 %v311
        %1167 = vmatpush1.msra.mxu0 %v310
        %1168 = vmatprep.subr.mxu0 %v308
        %1169 = vmatpush1.msra.mxu0 %v307
        %1170 = vmatprep.subr.mxu0 %v305
        %1171 = vmatpush1.msra.mxu0 %v304
        %1172 = vmatprep.subr.mxu0 %v302
        %1173 = vmatpush1.msra.mxu0 %v301
        %1174 = vmatprep.subr.mxu0 0.0
        %1175 = vmatpush2.msra.mxu0 0.0
        %1176 = vmatprep.subr.mxu0 0.0
        %1177 = vmatpush2.msra.mxu0 0.0
        %1178 = vmatprep.subr.mxu0 0.0
        %1179 = vmatpush2.msra.mxu0 0.0
        %1180 = vmatprep.subr.mxu0 0.0
        %1181 = vmatpush2.msra.mxu0 0.0
        %1182 = vmatprep.subr.mxu0 0.0
        %1183 = vmatpush2.msra.mxu0 0.0
        %1184 = vmatprep.subr.mxu0 0.0
        %1185 = vmatpush2.msra.mxu0 0.0
        %1186 = vmatprep.subr.mxu0 0.0
        %1187 = vmatpush2.msra.mxu0 0.0
        %1188 = vmatprep.subr.mxu0 0.0
        %1189 = vmatpush2.msra.mxu0 0.0
        %1190 = vmatprep.subr.mxu0 0.0
        %1191 = vmatpush2.msra.mxu0 0.0
        %1192 = vmatprep.subr.mxu0 0.0
        %1193 = vmatpush2.msra.mxu0 0.0
        %1194 = vmatprep.subr.mxu0 0.0
        %1195 = vmatpush2.msra.mxu0 0.0
        %1196 = vmatprep.subr.mxu0 0.0
        %1197 = vmatpush2.msra.mxu0 0.0
        %1198 = vmatprep.subr.mxu0 0.0
        %1199 = vmatpush2.msra.mxu0 0.0
        %1200 = vmatprep.subr.mxu0 0.0
        %1201 = vmatpush2.msra.mxu0 0.0
        %1202 = vmatprep.subr.mxu0 0.0
        %1203 = vmatpush2.msra.mxu0 0.0
        %1204 = vmatprep.subr.mxu0 0.0
        %1205 = vmatpush2.msra.mxu0 0.0
        %1206 = vmatprep.mubr.f32.mxu0 0.0
        %1207 = vmatmul.mubr.f32.gmra.mxu0 %v995
        %v1208 = vpop.f32.mrf.mxu0
        %v1209 = vadd.f32 0.0, %v1208
        %v1210 = vpop.f32.mrf.mxu0
        %v1211 = vadd.f32 0.0, %v1210
        %1212 = vdwg.mxu0
        %1213 = vmatprep.subr.mxu0 0.0
        %1214 = vmatpush1.msra.mxu0 %v348
        %1215 = vmatprep.subr.mxu0 0.0
        %1216 = vmatpush1.msra.mxu0 %v345
        %1217 = vmatprep.subr.mxu0 0.0
        %1218 = vmatpush1.msra.mxu0 %v342
        %1219 = vmatprep.subr.mxu0 0.0
        %1220 = vmatpush1.msra.mxu0 %v339
        %1221 = vmatprep.subr.mxu0 0.0
        %1222 = vmatpush1.msra.mxu0 %v336
        %1223 = vmatprep.subr.mxu0 0.0
        %1224 = vmatpush1.msra.mxu0 %v333
        %1225 = vmatprep.subr.mxu0 0.0
        %1226 = vmatpush1.msra.mxu0 %v330
        %1227 = vmatprep.subr.mxu0 0.0
        %1228 = vmatpush1.msra.mxu0 %v327
        %1229 = vmatprep.subr.mxu0 0.0
        %1230 = vmatpush1.msra.mxu0 %v324
        %1231 = vmatprep.subr.mxu0 0.0
        %1232 = vmatpush1.msra.mxu0 %v321
        %1233 = vmatprep.subr.mxu0 0.0
        %1234 = vmatpush1.msra.mxu0 %v318
        %1235 = vmatprep.subr.mxu0 0.0
        %1236 = vmatpush1.msra.mxu0 %v315
        %1237 = vmatprep.subr.mxu0 0.0
        %1238 = vmatpush1.msra.mxu0 %v312
        %1239 = vmatprep.subr.mxu0 0.0
        %1240 = vmatpush1.msra.mxu0 %v309
        %1241 = vmatprep.subr.mxu0 0.0
        %1242 = vmatpush1.msra.mxu0 %v306
        %1243 = vmatprep.subr.mxu0 0.0
        %1244 = vmatpush1.msra.mxu0 %v303
        %1245 = vmatprep.subr.mxu0 0.0
        %1246 = vmatpush2.msra.mxu0 0.0
        %1247 = vmatprep.subr.mxu0 0.0
        %1248 = vmatpush2.msra.mxu0 0.0
        %1249 = vmatprep.subr.mxu0 0.0
        %1250 = vmatpush2.msra.mxu0 0.0
        %1251 = vmatprep.subr.mxu0 0.0
        %1252 = vmatpush2.msra.mxu0 0.0
        %1253 = vmatprep.subr.mxu0 0.0
        %1254 = vmatpush2.msra.mxu0 0.0
        %1255 = vmatprep.subr.mxu0 0.0
        %1256 = vmatpush2.msra.mxu0 0.0
        %1257 = vmatprep.subr.mxu0 0.0
        %1258 = vmatpush2.msra.mxu0 0.0
        %1259 = vmatprep.subr.mxu0 0.0
        %1260 = vmatpush2.msra.mxu0 0.0
        %1261 = vmatprep.subr.mxu0 0.0
        %1262 = vmatpush2.msra.mxu0 0.0
        %1263 = vmatprep.subr.mxu0 0.0
        %1264 = vmatpush2.msra.mxu0 0.0
        %1265 = vmatprep.subr.mxu0 0.0
        %1266 = vmatpush2.msra.mxu0 0.0
        %1267 = vmatprep.subr.mxu0 0.0
        %1268 = vmatpush2.msra.mxu0 0.0
        %1269 = vmatprep.subr.mxu0 0.0
        %1270 = vmatpush2.msra.mxu0 0.0
        %1271 = vmatprep.subr.mxu0 0.0
        %1272 = vmatpush2.msra.mxu0 0.0
        %1273 = vmatprep.subr.mxu0 0.0
        %1274 = vmatpush2.msra.mxu0 0.0
        %1275 = vmatprep.subr.mxu0 0.0
        %1276 = vmatpush2.msra.mxu0 0.0
        %1277 = vmatprep.mubr.f32.mxu0 0.0
        %1278 = vmatmul.mubr.f32.gmra.mxu0 %v995
        %v1279 = vpop.f32.mrf.mxu0
        %v1280 = vadd.f32 0.0, %v1279
        %v1281 = vpop.f32.mrf.mxu0
        %1282 = vdwg.mxu0
        %v1283 = vadd.f32 %v1068, %v1209
        %v1284 = vmul.f32 %v1283, 0.5
        %v1285 = vtanh.pop %v1284
        %v1286 = vmul.f32 %v1285, 0.5
        %v1287 = vadd.f32 %v1286, 0.5
        %v1288 = vadd.f32 %v1070, %v1211
        %v1289 = vmul.f32 %v1288, 0.5
        %v1290 = vtanh.pop %v1289
        %v1291 = vmul.f32 %v1290, 0.5
        %v1292 = vadd.f32 %v1291, 0.5
        %v1293 = vadd.f32 %v1280, %v371
        %v1294 = vmul.f32 %v1287, %v1293
        %v1295 = vadd.f32 %v1139, %v1294
        %v1296 = vtanh.pop %v1295
        %v1297 = vsub.f32 1.0, %v1292
        %v1298 = vmul.f32 %v1297, %v1296
        %v1299 = vmul.f32 %v1292, %v995
        %v1300 = vadd.f32 %v1298, %v1299
        %s1301 = sadd.s32 %s679, 2
        %p1302 = scmp.lt.s32.totalorder %s1301, 8
        %s1303 = scalar_select %p1302, 1, 0
        %v1304 = vstv %s1303
        %vm1305 = vcmp.eq.s32.totalorder %v1304, 1
        %v1306 = vsel %vm1305, %v1300, %v995
        %1307 = vst [vmem:[%s283] sm:$0xff] %v1306
        %p1308 = scmp.lt.s32.totalorder %s20, 1
        %s1309 = scalar_select %p1308, %s20, 1
        %s1310 = smul.addr %s1309, 8
        %s1311 = scalar_lea.vmem %s5, %s1310
        // Predicated region
        $region83: #{sent_classifier_forward.1} parent=73 // pred_check
          %p1312 = pneg %p158
        $region84: #{sent_classifier_forward.1} parent=73 // pred_check_branch
          %1314 = sbr.rel (%p1312) target = $region86
        $region85: #{sent_classifier_forward.1} parent=73 // pred_region
          _
        $region86: #{sent_classifier_forward.1} parent=73 // pred_fallthru
          _
      $region74: #{sent_classifier_forward.1} parent=5 // pred_fallthru
        _
      %p1315 = scmp.le.s32.totalorder 2, %s11
      // Predicated region
      $region87: #{sent_classifier_forward.1} parent=5 // pred_check
        %p1316 = pneg %p1315
      $region88: #{sent_classifier_forward.1} parent=5 // pred_check_branch
        %1318 = sbr.rel (%p1316) target = $region90
      $region89: #{sent_classifier_forward.1} parent=5 // pred_region
        %s1319 = ssub.s32 %s11, 2
        // Predicated region
        $region91: #{sent_classifier_forward.1} parent=89 // pred_check
          %p1320 = pneg %p164
        $region92: #{sent_classifier_forward.1} parent=89 // pred_check_branch
          %1322 = sbr.rel (%p1320) target = $region94
        $region93: #{sent_classifier_forward.1} parent=89 // pred_region
          %p1323 = scmp.lt.s32.totalorder %s22, 1
          %s1324 = scalar_select %p1323, %s22, 1
          %s1325 = smul.addr %s1324, 8
          %s1326 = scalar_lea.vmem %s5, %s1325
        $region94: #{sent_classifier_forward.1} parent=89 // pred_fallthru
          _
      $region90: #{sent_classifier_forward.1} parent=5 // pred_fallthru
        _
    $region6: #{sent_classifier_forward.1} parent=1 // loop_footer
      %s15 = sadd.s32 1, %s11
    $region7: #{sent_classifier_forward.1} parent=1 // loop_footer_branch
      %10 = sbr.rel target = $region3
    $region8: #{sent_classifier_forward.1} parent=1 // loop_exit
      _

</llo_original>
